<compile_context>
chip_gen: v7x
topology: tpu7x:2x2x1
jax: 0.10.0
libtpu: 0.0.40
codegen_flags: <defaults>
</compile_context>

<pallas_src>
import functools

import jax
import jax.numpy as jnp
from jax.experimental import pallas as pl
from jax.experimental.pallas import tpu as pltpu

LN_EPS = 1e-12  # BERT-style LayerNorm epsilon

# rows of the packed (8, H) parameter tile
_ROW_EMB_G, _ROW_EMB_B, _ROW_DENSE_B, _ROW_MAIN_G, _ROW_MAIN_B, _ROW_POOL_B = range(6)


# ----------------------------------------------------------------------------
# Fused Pallas kernel (the entire forward hot path, one launch)
# ----------------------------------------------------------------------------
def _layernorm_f32(x, gamma, beta):
    mu = jnp.mean(x, axis=-1, keepdims=True)
    var = jnp.mean((x - mu) ** 2, axis=-1, keepdims=True)
    return (x - mu) * jax.lax.rsqrt(var + LN_EPS) * gamma + beta


def _fused_forward_kernel(tok_ref, seg_ref,              # (TB,1) int32 ids for this row tile
                          wtab_ref, stab_ref, pos_ref,   # resident (V,H),(Tp,H),(TB,H) f32 tables
                          par_ref,                       # resident packed (8,H) f32 param vectors
                          w_ref, pw_ref,                 # resident (H,H) bf16 dense / pooler weights
                          hid_ref, pool_ref,             # outputs: (TB,H) f32, (B_pad,H) f32 resident
                          pool_in,                       # scratch: (B_pad,H) f32 first-token rows
                          *, seq_len, starts_per_tile):
    step = pl.program_id(0)
    TB = tok_ref.shape[0]
    V = wtab_ref.shape[0]
    T = stab_ref.shape[0]

    par = par_ref[...]                                   # (8, H) f32, one resident tile
    emb_g, emb_b = par[_ROW_EMB_G:_ROW_EMB_G + 1], par[_ROW_EMB_B:_ROW_EMB_B + 1]
    dense_b = par[_ROW_DENSE_B:_ROW_DENSE_B + 1]
    main_g, main_b = par[_ROW_MAIN_G:_ROW_MAIN_G + 1], par[_ROW_MAIN_B:_ROW_MAIN_B + 1]
    pool_b = par[_ROW_POOL_B:_ROW_POOL_B + 1]

    @pl.when(step == 0)
    def _init():
        pool_in[...] = jnp.zeros_like(pool_in)

    # ---- Stage 1: embeddings.  Gather = one-hot @ table on the MXU (exact in
    # f32 for this toy vocab); tables stay resident in VMEM, no HBM gather.
    tok = tok_ref[...]                                   # (TB, 1) int32
    seg = seg_ref[...]                                   # (TB, 1) int32
    tok_oh = (jax.lax.broadcasted_iota(jnp.int32, (TB, V), 1) == tok).astype(jnp.float32)
    seg_oh = (jax.lax.broadcasted_iota(jnp.int32, (TB, T), 1) == seg).astype(jnp.float32)
    x = (jnp.dot(tok_oh, wtab_ref[...], preferred_element_type=jnp.float32)
         + jnp.dot(seg_oh, stab_ref[...], preferred_element_type=jnp.float32)
         + pos_ref[...])
    x = _layernorm_f32(x, emb_g, emb_b)                  # (TB, H) f32

    # ---- Stage 2: main layer  y = LayerNorm(x + (x @ W + b)).
    # bf16 operands on the MXU (128-row LHS), f32 accumulation, f32 LN epilogue.
    h = jnp.dot(x.astype(jnp.bfloat16), w_ref[...],
                preferred_element_type=jnp.float32) + dense_b
    y = _layernorm_f32(x + h, main_g, main_b)
    hid_ref[...] = y                                     # lane-dense unmasked store

    # ---- Stage 3a: stash the first-token row of every sequence starting in
    # this tile into the resident (B_pad, H) scratch.  Tiles are sequence
    # aligned (TB % S == 0), so the in-tile offsets are static.
    base = step * starts_per_tile
    row_ids = jax.lax.broadcasted_iota(jnp.int32, (pool_in.shape[0], 1), 0)
    acc = pool_in[...]
    for j in range(starts_per_tile):                     # tiny static loop
        first_row = y[j * seq_len:j * seq_len + 1, :]    # (1, H)
        acc = jnp.where(row_ids == base + j, first_row, acc)
    pool_in[...] = acc

    # ---- Stage 3b: ONE batched pooler matmul at the final grid step.
    @pl.when(step == pl.num_programs(0) - 1)
    def _pooler():
        p = jnp.dot(pool_in[...].astype(jnp.bfloat16), pw_ref[...],
                    preferred_element_type=jnp.float32) + pool_b
        pool_ref[...] = jnp.tanh(p)


def fused_bert_forward(token_ids, segment_ids,
                       word_table, seg_table, pos_table,
                       params_pack, dense_w, pool_w, *, row_tile=128):
    """One pallas_call for the full embed -> main -> pooler pipeline."""
    B, S = token_ids.shape
    V, H = word_table.shape
    T_pad = seg_table.shape[0]

    # Row tile covers whole sequences so sequence-start rows sit at static
    # in-tile offsets (batched pooler) and one resident position block suffices.
    TB = row_tile if row_tile % S == 0 else S
    assert TB % 8 == 0, "row tile must be a multiple of the sublane count"
    starts_per_tile = TB // S

    N = B * S
    NT = pl.cdiv(N, TB)
    N_pad = NT * TB
    n_seq_pad = N_pad // S                        # sequences incl. padded ones
    B_pad = ((max(8, n_seq_pad) + 7) // 8) * 8

    tok = token_ids.reshape(N, 1).astype(jnp.int32)
    seg = segment_ids.reshape(N, 1).astype(jnp.int32)
    if N_pad > N:
        tok = jnp.pad(tok, ((0, N_pad - N), (0, 0)))
        seg = jnp.pad(seg, ((0, N_pad - N), (0, 0)))

    # Positions repeat every S rows and tiles are sequence-aligned, so a single
    # resident (TB, H) position block serves every grid step.
    pos_block = jnp.tile(pos_table[:S], (starts_per_tile, 1))

    ids_spec = pl.BlockSpec((TB, 1), lambda i: (i, 0))
    resident = lambda shape: pl.BlockSpec(shape, lambda i: (0, 0))  # stays in VMEM

    kernel = functools.partial(_fused_forward_kernel,
                               seq_len=S, starts_per_tile=starts_per_tile)

    hidden, pooled = pl.pallas_call(
        kernel,
        out_shape=(jax.ShapeDtypeStruct((N_pad, H), jnp.float32),
                   jax.ShapeDtypeStruct((B_pad, H), jnp.float32)),
        grid=(NT,),
        in_specs=[ids_spec, ids_spec,
                  resident((V, H)), resident((T_pad, H)), resident((TB, H)),
                  resident((8, H)),
                  resident((H, H)), resident((H, H))],
        out_specs=(pl.BlockSpec((TB, H), lambda i: (i, 0)),
                   pl.BlockSpec((B_pad, H), lambda i: (0, 0))),
        scratch_shapes=[pltpu.VMEM((B_pad, H), jnp.float32)],
        # Pooled output / first-token scratch carry state across row tiles, so
        # the row-tile axis must run sequentially (loses v7x 2-TC sharding for
        # this toy; at scale split the pooler out or shard by batch instead).
        compiler_params=pltpu.CompilerParams(
            dimension_semantics=("arbitrary",)),
    )(tok, seg, word_table, seg_table, pos_block, params_pack, dense_w, pool_w)

    hidden = hidden[:N].reshape(B, S, H)
    return hidden, pooled[:B]


# ----------------------------------------------------------------------------
# Base class: mirrors the PyTorch PreTrainedModel forward orchestration
# ----------------------------------------------------------------------------
class PreTrainedModel:
    """JAX/Pallas port of bert4torch PreTrainedModel (forward-path only)."""

    def __init__(self, initializer_range=0.02, keep_tokens=None,
                 compound_tokens=None, **kwargs):
        self.initializer_range = initializer_range
        self.keep_tokens = keep_tokens
        self.compound_tokens = compound_tokens
        self.attention_bias = None
        self.position_bias = None
        self.quantized = False
        self.add_trainer = kwargs.get('add_trainer', False)
        self.dtype = None

    # --- orchestration identical to the torch base class ---
    def args_segmentate(self, inputs, **model_kwargs):
        if len(inputs) == 1 and isinstance(inputs[0], (tuple, list)):
            return inputs[0]
        return inputs

    def forward(self, *inputs, **model_kwargs):
        inputs = self.args_segmentate(inputs, **model_kwargs)
        model_kwargs = self.apply_embeddings(*inputs, **model_kwargs)
        model_kwargs = self.apply_main_layers(**model_kwargs)
        outputs = self.apply_final_layers(**model_kwargs)
        if model_kwargs.get('use_states', False):
            return (outputs, model_kwargs)
        return outputs

    __call__ = forward

    def predict(self, *inputs, **model_kwargs):
        return self.forward(*inputs, **model_kwargs)

    def compute_attention_bias(self, inputs=None):
        return self.attention_bias

    def compute_position_bias(self, inputs=None):
        return self.position_bias

    # abstract in the base class; concrete subclass below supplies them
    def apply_embeddings(self, *inputs, **model_kwargs):
        raise NotImplementedError

    def apply_main_layers(self, *inputs, **model_kwargs):
        raise NotImplementedError

    def apply_final_layers(self, *inputs, **model_kwargs):
        raise NotImplementedError

    # TODO(synk): checkpoint I/O (from_pretrained / save_pretrained), quantize,
    # peft/adapter/device_map plumbing are host-side utilities, not kernels.


# ----------------------------------------------------------------------------
# Minimal concrete instantiation of the abstract stages (synthetic weights).
# The three stages stage operands; the fused Pallas kernel launches once.
# ----------------------------------------------------------------------------
class TinyBertModel(PreTrainedModel):
    def __init__(self, vocab_size=64, type_vocab_size=2, max_position=64,
                 hidden_size=128, **kwargs):
        super().__init__(**kwargs)
        H = hidden_size
        self.hidden_size = H
        self.type_vocab_size = type_vocab_size
        key = jax.random.PRNGKey(0)
        k1, k2, k3, k4, k5 = jax.random.split(key, 5)
        std = self.initializer_range
        # init_model_weights semantics: normal(0, initializer_range) for
        # Linear/Embedding weights, zeros for biases, ones/zeros for LayerNorm.
        self.word_table = std * jax.random.normal(k1, (vocab_size, H), jnp.float32)
        # segment table padded to >=8 rows (sublane tile); ids must stay < type_vocab_size
        t_pad = max(type_vocab_size, 8)
        seg = std * jax.random.normal(k2, (type_vocab_size, H), jnp.float32)
        self.seg_table = jnp.zeros((t_pad, H), jnp.float32).at[:type_vocab_size].set(seg)
        self.pos_table = std * jax.random.normal(k3, (max_position, H), jnp.float32)
        # matmul weights stored bf16 (MXU operands); biases / LN params f32
        self.dense_w = (std * jax.random.normal(k4, (H, H), jnp.float32)).astype(jnp.bfloat16)
        self.pool_w = (std * jax.random.normal(k5, (H, H), jnp.float32)).astype(jnp.bfloat16)
        self.emb_g = jnp.ones((H,), jnp.float32)
        self.emb_b = jnp.zeros((H,), jnp.float32)
        self.dense_b = jnp.zeros((H,), jnp.float32)
        self.main_g = jnp.ones((H,), jnp.float32)
        self.main_b = jnp.zeros((H,), jnp.float32)
        self.pool_b = jnp.zeros((H,), jnp.float32)
        # pack the six (H,) vectors into one (8, H) resident tile (one DMA)
        pack = jnp.stack([self.emb_g, self.emb_b, self.dense_b,
                          self.main_g, self.main_b, self.pool_b], axis=0)
        self.params_pack = jnp.concatenate(
            [pack, jnp.zeros((2, H), jnp.float32)], axis=0)

    def apply_embeddings(self, token_ids, segment_ids=None, **model_kwargs):
        if segment_ids is None:
            segment_ids = jnp.zeros_like(token_ids)
        # Stage operands only: the embedding gather/sum/LN is fused into the
        # single pallas_call issued in apply_final_layers.
        # TODO(synk): validate segment_ids < type_vocab_size for non-toy use
        # (an OOB id would silently read a zero-padded table row).
        model_kwargs.update(token_ids=token_ids, segment_ids=segment_ids)
        return model_kwargs

    def apply_main_layers(self, **model_kwargs):
        # Main-layer compute is fused with the embedding and pooler stages.
        return model_kwargs

    def apply_final_layers(self, token_ids=None, segment_ids=None, **model_kwargs):
        hidden, pooled = fused_bert_forward(
            token_ids, segment_ids,
            self.word_table, self.seg_table, self.pos_table,
            self.params_pack, self.dense_w, self.pool_w)
        # default output order: [last_hidden_state, pooled_output]
        return [hidden, pooled]


# ----------------------------------------------------------------------------
# Pure-JAX reference (same math, same bf16 matmul operands) for validation
# ----------------------------------------------------------------------------
def _reference_forward(model, token_ids, segment_ids):
    S = token_ids.shape[1]

    def ln(x, g, b):
        mu = jnp.mean(x, axis=-1, keepdims=True)
        var = jnp.mean((x - mu) ** 2, axis=-1, keepdims=True)
        return (x - mu) / jnp.sqrt(var + LN_EPS) * g + b

    x = (model.word_table[token_ids] + model.seg_table[segment_ids]
         + model.pos_table[:S][None, :, :])
    x = ln(x, model.emb_g, model.emb_b)
    h = jnp.einsum('bsh,hk->bsk', x.astype(jnp.bfloat16), model.dense_w,
                   preferred_element_type=jnp.float32) + model.dense_b
    y = ln(x + h, model.main_g, model.main_b)
    p = jnp.einsum('bh,hk->bk', y[:, 0, :].astype(jnp.bfloat16), model.pool_w,
                   preferred_element_type=jnp.float32) + model.pool_b
    return y, jnp.tanh(p)


# ----------------------------------------------------------------------------
if __name__ == "__main__":
    B, S, H = 4, 64, 128         # N = B*S = 256 rows -> 2 grid steps of 128 rows
    VOCAB, TYPES, MAXPOS = 64, 2, 64

    key = jax.random.PRNGKey(0)
    k_tok, k_seg = jax.random.split(key)
    token_ids = jax.random.randint(k_tok, (B, S), 0, VOCAB, dtype=jnp.int32)
    segment_ids = jax.random.randint(k_seg, (B, S), 0, TYPES, dtype=jnp.int32)

    model = TinyBertModel(vocab_size=VOCAB, type_vocab_size=TYPES,
                          max_position=MAXPOS, hidden_size=H)
    outputs = model(token_ids, segment_ids)
    last_hidden, pooled = outputs
    jax.block_until_ready(last_hidden)
    jax.block_until_ready(pooled)

    assert last_hidden.shape == (B, S, H)
    assert pooled.shape == (B, H)

    ref_hidden, ref_pooled = _reference_forward(model, token_ids, segment_ids)
    assert bool(jnp.allclose(last_hidden, ref_hidden, atol=2e-2, rtol=2e-2)), \
        "hidden state mismatch vs reference"
    assert bool(jnp.allclose(pooled, ref_pooled, atol=2e-2, rtol=2e-2)), \
        "pooled output mismatch vs reference"

    print("KERNEL_OK")
</pallas_src>

<mosaic_0001>
module attributes {stable_mosaic.version = 11 : i64} {
  func.func @_fused_forward_kernel(%arg0: i32, %arg1: memref<128x1xi32, #tpu.memory_space<vmem>>, %arg2: memref<128x1xi32, #tpu.memory_space<vmem>>, %arg3: memref<64x128xf32, #tpu.memory_space<vmem>>, %arg4: memref<8x128xf32, #tpu.memory_space<vmem>>, %arg5: memref<128x128xf32, #tpu.memory_space<vmem>>, %arg6: memref<8x128xf32, #tpu.memory_space<vmem>>, %arg7: memref<128x128xbf16, #tpu.memory_space<vmem>>, %arg8: memref<128x128xbf16, #tpu.memory_space<vmem>>, %arg9: memref<128x128xf32, #tpu.memory_space<vmem>>, %arg10: memref<8x128xf32, #tpu.memory_space<vmem>>, %arg11: memref<8x128xf32, #tpu.memory_space<vmem>>) attributes {dimension_semantics = [#tpu.dimension_semantics<arbitrary>], iteration_bounds = array<i64: 2>, scalar_prefetch = 0 : i64, scratch_operands = 1 : i64, tpu.core_type = #tpu.core_type<tc>, window_params = [{transform_indices = @transform_0, window_bounds = array<i64: 128, 1>}, {transform_indices = @transform_1, window_bounds = array<i64: 128, 1>}, {pipeline_mode = #tpu.pipeline_mode<synchronous>, transform_indices = @transform_2, window_bounds = array<i64: 64, 128>}, {pipeline_mode = #tpu.pipeline_mode<synchronous>, transform_indices = @transform_3, window_bounds = array<i64: 8, 128>}, {pipeline_mode = #tpu.pipeline_mode<synchronous>, transform_indices = @transform_4, window_bounds = array<i64: 128, 128>}, {pipeline_mode = #tpu.pipeline_mode<synchronous>, transform_indices = @transform_5, window_bounds = array<i64: 8, 128>}, {pipeline_mode = #tpu.pipeline_mode<synchronous>, transform_indices = @transform_6, window_bounds = array<i64: 128, 128>}, {pipeline_mode = #tpu.pipeline_mode<synchronous>, transform_indices = @transform_7, window_bounds = array<i64: 128, 128>}, {transform_indices = @transform_8, window_bounds = array<i64: 128, 128>}, {pipeline_mode = #tpu.pipeline_mode<synchronous>, transform_indices = @transform_9, window_bounds = array<i64: 8, 128>}]} {
    %c0 = arith.constant 0 : index
    %c0_0 = arith.constant 0 : index
    %0 = vector.load %arg6[%c0, %c0_0] : memref<8x128xf32, #tpu.memory_space<vmem>>, vector<8x128xf32>
    %1 = vector.extract_strided_slice %0 {offsets = [0, 0], sizes = [1, 128], strides = [1, 1]} : vector<8x128xf32> to vector<1x128xf32>
    %2 = vector.extract_strided_slice %0 {offsets = [1, 0], sizes = [1, 128], strides = [1, 1]} : vector<8x128xf32> to vector<1x128xf32>
    %3 = vector.extract_strided_slice %0 {offsets = [2, 0], sizes = [1, 128], strides = [1, 1]} : vector<8x128xf32> to vector<1x128xf32>
    %4 = vector.extract_strided_slice %0 {offsets = [3, 0], sizes = [1, 128], strides = [1, 1]} : vector<8x128xf32> to vector<1x128xf32>
    %5 = vector.extract_strided_slice %0 {offsets = [4, 0], sizes = [1, 128], strides = [1, 1]} : vector<8x128xf32> to vector<1x128xf32>
    %6 = vector.extract_strided_slice %0 {offsets = [5, 0], sizes = [1, 128], strides = [1, 1]} : vector<8x128xf32> to vector<1x128xf32>
    %c0_i32 = arith.constant 0 : i32
    %7 = arith.cmpi eq, %arg0, %c0_i32 : i32
    %8 = arith.extui %7 : i1 to i32
    %c0_i32_1 = arith.constant 0 : i32
    %9 = arith.cmpi ne, %8, %c0_i32_1 : i32
    scf.if %9 {
      %cst_35 = arith.constant 0.000000e+00 : f32
      %105 = vector.broadcast %cst_35 : f32 to vector<8x128xf32>
      %c0_36 = arith.constant 0 : index
      %c0_37 = arith.constant 0 : index
      %106 = vector.load %arg11[%c0_36, %c0_37] : memref<8x128xf32, #tpu.memory_space<vmem>>, vector<8x128xf32>
      tpu.vector_store %arg11[%c0_36, %c0_37], %105 {strides = array<i32>} : memref<8x128xf32, #tpu.memory_space<vmem>>, vector<8x128xf32>,
    } else {
    }
    %c0_2 = arith.constant 0 : index
    %c0_3 = arith.constant 0 : index
    %10 = vector.load %arg1[%c0_2, %c0_3] : memref<128x1xi32, #tpu.memory_space<vmem>>, vector<128x1xi32>
    %c0_4 = arith.constant 0 : index
    %c0_5 = arith.constant 0 : index
    %11 = vector.load %arg2[%c0_4, %c0_5] : memref<128x1xi32, #tpu.memory_space<vmem>>, vector<128x1xi32>
    %12 = tpu.iota {dimensions = array<i32: 1>} : vector<128x64xi32>
    %13 = vector.broadcast %10 : vector<128x1xi32> to vector<128x64xi32>
    %14 = arith.cmpi eq, %12, %13 : vector<128x64xi32>
    %15 = arith.extui %14 : vector<128x64xi1> to vector<128x64xi32>
    %16 = arith.sitofp %15 : vector<128x64xi32> to vector<128x64xf32>
    %17 = tpu.iota {dimensions = array<i32: 1>} : vector<128x8xi32>
    %18 = vector.broadcast %11 : vector<128x1xi32> to vector<128x8xi32>
    %19 = arith.cmpi eq, %17, %18 : vector<128x8xi32>
    %20 = arith.extui %19 : vector<128x8xi1> to vector<128x8xi32>
    %21 = arith.sitofp %20 : vector<128x8xi32> to vector<128x8xf32>
    %c0_6 = arith.constant 0 : index
    %c0_7 = arith.constant 0 : index
    %22 = vector.load %arg3[%c0_6, %c0_7] : memref<64x128xf32, #tpu.memory_space<vmem>>, vector<64x128xf32>
    %cst = arith.constant dense<0.000000e+00> : vector<128x128xf32>
    %23 = tpu.matmul %16, %22, %cst {dimension_numbers = #tpu.dot_dimension_numbers<[1], [0], [0], [1], [0, 0, 1, 1], [], []>} : vector<128x64xf32>, vector<64x128xf32>, vector<128x128xf32> -> vector<128x128xf32>
    %c0_8 = arith.constant 0 : index
    %c0_9 = arith.constant 0 : index
    %24 = vector.load %arg4[%c0_8, %c0_9] : memref<8x128xf32, #tpu.memory_space<vmem>>, vector<8x128xf32>
    %cst_10 = arith.constant dense<0.000000e+00> : vector<128x128xf32>
    %25 = tpu.matmul %21, %24, %cst_10 {dimension_numbers = #tpu.dot_dimension_numbers<[1], [0], [0], [1], [0, 0, 1, 1], [], []>} : vector<128x8xf32>, vector<8x128xf32>, vector<128x128xf32> -> vector<128x128xf32>
    %26 = arith.addf %23, %25 : vector<128x128xf32>
    %c0_11 = arith.constant 0 : index
    %c0_12 = arith.constant 0 : index
    %27 = vector.load %arg5[%c0_11, %c0_12] : memref<128x128xf32, #tpu.memory_space<vmem>>, vector<128x128xf32>
    %28 = arith.addf %26, %27 : vector<128x128xf32>
    %cst_13 = arith.constant dense<0.000000e+00> : vector<128xf32>
    %29 = vector.multi_reduction <add>, %28, %cst_13 [1] : vector<128x128xf32> to vector<128xf32>
    %30 = vector.shape_cast %29 : vector<128xf32> to vector<128x1xf32>
    %cst_14 = arith.constant 1.280000e+02 : f32
    %31 = vector.broadcast %cst_14 : f32 to vector<128x1xf32>
    %32 = arith.divf %30, %31 : vector<128x1xf32>
    %33 = vector.broadcast %32 : vector<128x1xf32> to vector<128x128xf32>
    %34 = arith.subf %28, %33 : vector<128x128xf32>
    %35 = arith.mulf %34, %34 : vector<128x128xf32>
    %cst_15 = arith.constant dense<0.000000e+00> : vector<128xf32>
    %36 = vector.multi_reduction <add>, %35, %cst_15 [1] : vector<128x128xf32> to vector<128xf32>
    %37 = vector.shape_cast %36 : vector<128xf32> to vector<128x1xf32>
    %cst_16 = arith.constant 1.280000e+02 : f32
    %38 = vector.broadcast %cst_16 : f32 to vector<128x1xf32>
    %39 = arith.divf %37, %38 : vector<128x1xf32>
    %40 = vector.broadcast %32 : vector<128x1xf32> to vector<128x128xf32>
    %41 = arith.subf %28, %40 : vector<128x128xf32>
    %cst_17 = arith.constant 9.99999996E-13 : f32
    %42 = vector.broadcast %cst_17 : f32 to vector<128x1xf32>
    %43 = arith.addf %39, %42 : vector<128x1xf32>
    %44 = math.rsqrt %43 : vector<128x1xf32>
    %45 = vector.broadcast %44 : vector<128x1xf32> to vector<128x128xf32>
    %46 = arith.mulf %41, %45 : vector<128x128xf32>
    %47 = vector.broadcast %1 : vector<1x128xf32> to vector<128x128xf32>
    %48 = arith.mulf %46, %47 : vector<128x128xf32>
    %49 = vector.broadcast %2 : vector<1x128xf32> to vector<128x128xf32>
    %50 = arith.addf %48, %49 : vector<128x128xf32>
    %51 = arith.truncf %50 : vector<128x128xf32> to vector<128x128xbf16>
    %c0_18 = arith.constant 0 : index
    %c0_19 = arith.constant 0 : index
    %52 = vector.load %arg7[%c0_18, %c0_19] : memref<128x128xbf16, #tpu.memory_space<vmem>>, vector<128x128xbf16>
    %cst_20 = arith.constant dense<0.000000e+00> : vector<128x128xf32>
    %53 = tpu.matmul %51, %52, %cst_20 {dimension_numbers = #tpu.dot_dimension_numbers<[1], [0], [0], [1], [0, 0, 1, 1], [], []>} : vector<128x128xbf16>, vector<128x128xbf16>, vector<128x128xf32> -> vector<128x128xf32>
    %54 = vector.broadcast %3 : vector<1x128xf32> to vector<128x128xf32>
    %55 = arith.addf %53, %54 : vector<128x128xf32>
    %56 = arith.addf %50, %55 : vector<128x128xf32>
    %cst_21 = arith.constant dense<0.000000e+00> : vector<128xf32>
    %57 = vector.multi_reduction <add>, %56, %cst_21 [1] : vector<128x128xf32> to vector<128xf32>
    %58 = vector.shape_cast %57 : vector<128xf32> to vector<128x1xf32>
    %cst_22 = arith.constant 1.280000e+02 : f32
    %59 = vector.broadcast %cst_22 : f32 to vector<128x1xf32>
    %60 = arith.divf %58, %59 : vector<128x1xf32>
    %61 = vector.broadcast %60 : vector<128x1xf32> to vector<128x128xf32>
    %62 = arith.subf %56, %61 : vector<128x128xf32>
    %63 = arith.mulf %62, %62 : vector<128x128xf32>
    %cst_23 = arith.constant dense<0.000000e+00> : vector<128xf32>
    %64 = vector.multi_reduction <add>, %63, %cst_23 [1] : vector<128x128xf32> to vector<128xf32>
    %65 = vector.shape_cast %64 : vector<128xf32> to vector<128x1xf32>
    %cst_24 = arith.constant 1.280000e+02 : f32
    %66 = vector.broadcast %cst_24 : f32 to vector<128x1xf32>
    %67 = arith.divf %65, %66 : vector<128x1xf32>
    %68 = vector.broadcast %60 : vector<128x1xf32> to vector<128x128xf32>
    %69 = arith.subf %56, %68 : vector<128x128xf32>
    %cst_25 = arith.constant 9.99999996E-13 : f32
    %70 = vector.broadcast %cst_25 : f32 to vector<128x1xf32>
    %71 = arith.addf %67, %70 : vector<128x1xf32>
    %72 = math.rsqrt %71 : vector<128x1xf32>
    %73 = vector.broadcast %72 : vector<128x1xf32> to vector<128x128xf32>
    %74 = arith.mulf %69, %73 : vector<128x128xf32>
    %75 = vector.broadcast %4 : vector<1x128xf32> to vector<128x128xf32>
    %76 = arith.mulf %74, %75 : vector<128x128xf32>
    %77 = vector.broadcast %5 : vector<1x128xf32> to vector<128x128xf32>
    %78 = arith.addf %76, %77 : vector<128x128xf32>
    %c0_26 = arith.constant 0 : index
    %c0_27 = arith.constant 0 : index
    %79 = vector.load %arg9[%c0_26, %c0_27] : memref<128x128xf32, #tpu.memory_space<vmem>>, vector<128x128xf32>
    tpu.vector_store %arg9[%c0_26, %c0_27], %78 {strides = array<i32>} : memref<128x128xf32, #tpu.memory_space<vmem>>, vector<128x128xf32>,
    %c2_i32 = arith.constant 2 : i32
    %80 = arith.muli %arg0, %c2_i32 : i32
    %81 = tpu.iota {dimensions = array<i32: 0>} : vector<8x1xi32>
    %c0_28 = arith.constant 0 : index
    %c0_29 = arith.constant 0 : index
    %82 = vector.load %arg11[%c0_28, %c0_29] : memref<8x128xf32, #tpu.memory_space<vmem>>, vector<8x128xf32>
    %83 = vector.extract_strided_slice %78 {offsets = [0, 0], sizes = [1, 128], strides = [1, 1]} : vector<128x128xf32> to vector<1x128xf32>
    %c0_i32_30 = arith.constant 0 : i32
    %84 = arith.addi %80, %c0_i32_30 : i32
    %85 = vector.broadcast %84 : i32 to vector<8x1xi32>
    %86 = arith.cmpi eq, %81, %85 : vector<8x1xi32>
    %87 = vector.shape_cast %86 : vector<8x1xi1> to vector<8x1xi1>
    %88 = vector.broadcast %87 : vector<8x1xi1> to vector<8x128xi1>
    %89 = vector.shape_cast %83 : vector<1x128xf32> to vector<1x128xf32>
    %90 = vector.broadcast %89 : vector<1x128xf32> to vector<8x128xf32>
    %91 = arith.select %88, %90, %82 : vector<8x128xi1>, vector<8x128xf32>
    %92 = vector.extract_strided_slice %78 {offsets = [64, 0], sizes = [1, 128], strides = [1, 1]} : vector<128x128xf32> to vector<1x128xf32>
    %c1_i32 = arith.constant 1 : i32
    %93 = arith.addi %80, %c1_i32 : i32
    %94 = vector.broadcast %93 : i32 to vector<8x1xi32>
    %95 = arith.cmpi eq, %81, %94 : vector<8x1xi32>
    %96 = vector.shape_cast %95 : vector<8x1xi1> to vector<8x1xi1>
    %97 = vector.broadcast %96 : vector<8x1xi1> to vector<8x128xi1>
    %98 = vector.shape_cast %92 : vector<1x128xf32> to vector<1x128xf32>
    %99 = vector.broadcast %98 : vector<1x128xf32> to vector<8x128xf32>
    %100 = arith.select %97, %99, %91 : vector<8x128xi1>, vector<8x128xf32>
    %c0_31 = arith.constant 0 : index
    %c0_32 = arith.constant 0 : index
    %101 = vector.load %arg11[%c0_31, %c0_32] : memref<8x128xf32, #tpu.memory_space<vmem>>, vector<8x128xf32>
    tpu.vector_store %arg11[%c0_31, %c0_32], %100 {strides = array<i32>} : memref<8x128xf32, #tpu.memory_space<vmem>>, vector<8x128xf32>,
    %c1_i32_33 = arith.constant 1 : i32
    %102 = arith.cmpi eq, %arg0, %c1_i32_33 : i32
    %103 = arith.extui %102 : i1 to i32
    %c0_i32_34 = arith.constant 0 : i32
    %104 = arith.cmpi ne, %103, %c0_i32_34 : i32
    scf.if %104 {
      %c0_35 = arith.constant 0 : index
      %c0_36 = arith.constant 0 : index
      %105 = vector.load %arg11[%c0_35, %c0_36] : memref<8x128xf32, #tpu.memory_space<vmem>>, vector<8x128xf32>
      %106 = arith.truncf %105 : vector<8x128xf32> to vector<8x128xbf16>
      %c0_37 = arith.constant 0 : index
      %c0_38 = arith.constant 0 : index
      %107 = vector.load %arg8[%c0_37, %c0_38] : memref<128x128xbf16, #tpu.memory_space<vmem>>, vector<128x128xbf16>
      %cst_39 = arith.constant dense<0.000000e+00> : vector<8x128xf32>
      %108 = tpu.matmul %106, %107, %cst_39 {dimension_numbers = #tpu.dot_dimension_numbers<[1], [0], [0], [1], [0, 0, 1, 1], [], []>} : vector<8x128xbf16>, vector<128x128xbf16>, vector<8x128xf32> -> vector<8x128xf32>
      %109 = vector.broadcast %6 : vector<1x128xf32> to vector<8x128xf32>
      %110 = arith.addf %108, %109 : vector<8x128xf32>
      %111 = math.tanh %110 : vector<8x128xf32>
      %c0_40 = arith.constant 0 : index
      %c0_41 = arith.constant 0 : index
      %112 = vector.load %arg10[%c0_40, %c0_41] : memref<8x128xf32, #tpu.memory_space<vmem>>, vector<8x128xf32>
      tpu.vector_store %arg10[%c0_40, %c0_41], %111 {strides = array<i32>} : memref<8x128xf32, #tpu.memory_space<vmem>>, vector<8x128xf32>,
    } else {
    }
    return
  }
  func.func @transform_0(%arg0: i32) -> (i32, i32) {
    %c0_i32 = arith.constant 0 : i32
    %c0_i32_0 = arith.constant 0 : i32
    return %arg0, %c0_i32 : i32, i32
  }
  func.func @transform_1(%arg0: i32) -> (i32, i32) {
    %c0_i32 = arith.constant 0 : i32
    %c0_i32_0 = arith.constant 0 : i32
    return %arg0, %c0_i32 : i32, i32
  }
  func.func @transform_2(%arg0: i32) -> (i32, i32) {
    %c0_i32 = arith.constant 0 : i32
    %c0_i32_0 = arith.constant 0 : i32
    %c0_i32_1 = arith.constant 0 : i32
    return %c0_i32, %c0_i32_0 : i32, i32
  }
  func.func @transform_3(%arg0: i32) -> (i32, i32) {
    %c0_i32 = arith.constant 0 : i32
    %c0_i32_0 = arith.constant 0 : i32
    %c0_i32_1 = arith.constant 0 : i32
    return %c0_i32, %c0_i32_0 : i32, i32
  }
  func.func @transform_4(%arg0: i32) -> (i32, i32) {
    %c0_i32 = arith.constant 0 : i32
    %c0_i32_0 = arith.constant 0 : i32
    %c0_i32_1 = arith.constant 0 : i32
    return %c0_i32, %c0_i32_0 : i32, i32
  }
  func.func @transform_5(%arg0: i32) -> (i32, i32) {
    %c0_i32 = arith.constant 0 : i32
    %c0_i32_0 = arith.constant 0 : i32
    %c0_i32_1 = arith.constant 0 : i32
    return %c0_i32, %c0_i32_0 : i32, i32
  }
  func.func @transform_6(%arg0: i32) -> (i32, i32) {
    %c0_i32 = arith.constant 0 : i32
    %c0_i32_0 = arith.constant 0 : i32
    %c0_i32_1 = arith.constant 0 : i32
    return %c0_i32, %c0_i32_0 : i32, i32
  }
  func.func @transform_7(%arg0: i32) -> (i32, i32) {
    %c0_i32 = arith.constant 0 : i32
    %c0_i32_0 = arith.constant 0 : i32
    %c0_i32_1 = arith.constant 0 : i32
    return %c0_i32, %c0_i32_0 : i32, i32
  }
  func.func @transform_8(%arg0: i32) -> (i32, i32) {
    %c0_i32 = arith.constant 0 : i32
    %c0_i32_0 = arith.constant 0 : i32
    return %arg0, %c0_i32 : i32, i32
  }
  func.func @transform_9(%arg0: i32) -> (i32, i32) {
    %c0_i32 = arith.constant 0 : i32
    %c0_i32_0 = arith.constant 0 : i32
    %c0_i32_1 = arith.constant 0 : i32
    return %c0_i32, %c0_i32_0 : i32, i32
  }
}

</mosaic_0001>

<llo_original>
// kernel: tpu_custom_call.1
$region0: #{tpu_custom_call.1}
  #allocation0 [shape = 'u32[]', space=smem, size = 0x4, offset = 0x4, fixed_abs, tag = 'smem constant byte address 0x4 - core index']
  #allocation1 [shape = 'u32[144,128]{1,0:T(1,128)}', space=vmem, size = 0x12000, scoped, tag = 'internal scratch']
  #allocation2 [shape = 'f32[8,128]{1,0:T(8,128)}', space=vmem, size = 0x1000, scoped, tag = 'scratch operand']
  %s0 = inlined_call_operand.vmem [shape: s32[256,1], index: 0, kind: input, shape index: {}]
  %s1 = inlined_call_operand.vmem [shape: s32[256,1], index: 1, kind: input, shape index: {}]
  %s2 = inlined_call_operand.vmem [shape: f32[64,128], index: 2, kind: input, shape index: {}]
  %s3 = inlined_call_operand.vmem [shape: f32[8,128], index: 3, kind: input, shape index: {}]
  %s4 = inlined_call_operand.vmem [shape: f32[128,128], index: 4, kind: input, shape index: {}]
  %s5 = inlined_call_operand.vmem [shape: f32[8,128], index: 5, kind: input, shape index: {}]
  %s6 = inlined_call_operand.vmem [shape: bf16[128,128], index: 6, kind: input, shape index: {}]
  %s7 = inlined_call_operand.vmem [shape: bf16[128,128], index: 7, kind: input, shape index: {}]
  %s8 = inlined_call_operand.hbm [shape: f32[256,128], index: 8, kind: output, shape index: {0}]
  %s9 = inlined_call_operand.hbm [shape: f32[8,128], index: 9, kind: output, shape index: {1}]
  %10 = xla_tuple %s8, %s9
  %s11 = sld [smem:[#allocation0]]
  $region81: #{tpu_custom_call.1} parent=0
    _
  %s13 = ssub.s32 1, %s11
  %s14 = scalar_select 0, %s13, %s11
  $region1: #{tpu_custom_call.1} parent=0
    #allocation3 [shape = 'u8[131072]{0}', space=vmem, size = 0x20000, scoped, tag = 'output window, operand 0']
    #allocation4 [shape = 's32[2]{0}', space=sflag, size = 0x8, scoped, tag = 'scoped memory for tpu_custom_call.1']
    #allocation5 [shape = 'u8[4096]{0}', space=vmem, size = 0x1000, scoped, tag = 'output window, operand 1, single buffered']
    #allocation6 [shape = 's32[1]{0}', space=sflag, size = 0x4, scoped, tag = 'scoped memory for tpu_custom_call.1']
    %15 = vsyncpa [#allocation4], 0
    %s16 = scalar_lea.sflag [#allocation4], 1
    %17 = vsyncpa %s16, 0
    %18 = vsyncpa [#allocation6], 0
    loop: start=0, step=1, limit=4
    $region2: #{tpu_custom_call.1} parent=1 // loop_pre_header
      _
    $region3: #{tpu_custom_call.1} parent=1 // loop_header
      %s20 = sphi 0, %s24
      %p21 = scmp.ge.s32.totalorder %s20, 4
      %s30 = sphi 0, %s32
      %s33 = sphi 0, %s30
      %s34 = sphi 0, %s33
      %s50 = sphi 0, %s34
      %s56 = sphi 0, %s58
      %s59 = sphi 0, %s56
      %s60 = sphi 0, %s59
      %s76 = sphi 0, %s60
      %s80 = sphi 0, %s80
      %s82 = sphi 0, %s80
      %s83 = sphi 0, %s82
      %s97 = sphi 0, %s83
      %s101 = sphi 0, %s101
      %s103 = sphi 0, %s101
      %s104 = sphi 0, %s103
      %s118 = sphi 0, %s104
      %s122 = sphi 0, %s122
      %s124 = sphi 0, %s122
      %s125 = sphi 0, %s124
      %s139 = sphi 0, %s125
      %s143 = sphi 0, %s143
      %s145 = sphi 0, %s143
      %s146 = sphi 0, %s145
      %s160 = sphi 0, %s146
      %s164 = sphi 0, %s164
      %s166 = sphi 0, %s164
      %s167 = sphi 0, %s166
      %s181 = sphi 0, %s167
      %s185 = sphi 0, %s185
      %s187 = sphi 0, %s185
      %s188 = sphi 0, %s187
      %s202 = sphi 0, %s188
      %s208 = sphi 0, %s210
      %s211 = sphi 0, %s208
      %s212 = sphi 0, %s211
      %s228 = sphi 0, %s212
      %s232 = sphi 0, %s232
      %s234 = sphi 0, %s232
      %s235 = sphi 0, %s234
      %s249 = sphi 0, %s235
    $region4: #{tpu_custom_call.1} parent=1 // loop_header_branch
      %23 = sbr.rel (%p21) target = $region8
    $region5: #{tpu_custom_call.1} parent=1 // loop_body
      %s25 = ssub.s32 %s20, 1
      %s26 = ssub.s32 %s20, 2
      %s27 = sadd.s32 %s20, 1
      %s28 = ssub.s32 %s20, %s27
      %p29 = scmp.eq.s32.totalorder %s28, 0
      %s31 = sadd.s32 %s30, 1
      %s32 = scalar_select %p29, %s30, %s31
      %p35 = pneg %p29
      %p36 = scmp.eq.s32.totalorder %s20, 1
      %p37 = por %p35, %p36
      %p38 = scmp.ne.s32.totalorder %s30, %s33
      %p39 = scmp.eq.s32.totalorder %s20, 0
      %p40 = por %p38, %p39
      %p41 = scmp.ne.s32.totalorder %s30, %s33
      %p42 = scmp.eq.s32.totalorder %s25, 1
      %p43 = por %p41, %p42
      %p44 = scmp.ne.s32.totalorder %s33, %s34
      %p45 = scmp.eq.s32.totalorder %s25, 0
      %p46 = por %p44, %p45
      %p47 = scmp.ne.s32.totalorder %s33, %s34
      %p48 = scmp.eq.s32.totalorder %s26, 1
      %p49 = por %p47, %p48
      %p51 = scmp.ne.s32.totalorder %s34, %s50
      %p52 = scmp.eq.s32.totalorder %s26, 0
      %p53 = por %p51, %p52
      %s54 = ssub.s32 %s20, %s27
      %p55 = scmp.eq.s32.totalorder %s54, 0
      %s57 = sadd.s32 %s56, 1
      %s58 = scalar_select %p55, %s56, %s57
      %p61 = pneg %p55
      %p62 = scmp.eq.s32.totalorder %s20, 1
      %p63 = por %p61, %p62
      %p64 = scmp.ne.s32.totalorder %s56, %s59
      %p65 = scmp.eq.s32.totalorder %s20, 0
      %p66 = por %p64, %p65
      %p67 = scmp.ne.s32.totalorder %s56, %s59
      %p68 = scmp.eq.s32.totalorder %s25, 1
      %p69 = por %p67, %p68
      %p70 = scmp.ne.s32.totalorder %s59, %s60
      %p71 = scmp.eq.s32.totalorder %s25, 0
      %p72 = por %p70, %p71
      %p73 = scmp.ne.s32.totalorder %s59, %s60
      %p74 = scmp.eq.s32.totalorder %s26, 1
      %p75 = por %p73, %p74
      %p77 = scmp.ne.s32.totalorder %s60, %s76
      %p78 = scmp.eq.s32.totalorder %s26, 0
      %p79 = por %p77, %p78
      %s81 = sadd.s32 %s80, 1
      %p84 = scmp.eq.s32.totalorder %s20, 1
      %p85 = scmp.ne.s32.totalorder %s80, %s82
      %p86 = scmp.eq.s32.totalorder %s20, 0
      %p87 = por %p85, %p86
      %p88 = scmp.ne.s32.totalorder %s80, %s82
      %p89 = scmp.eq.s32.totalorder %s25, 1
      %p90 = por %p88, %p89
      %p91 = scmp.ne.s32.totalorder %s82, %s83
      %p92 = scmp.eq.s32.totalorder %s25, 0
      %p93 = por %p91, %p92
      %p94 = scmp.ne.s32.totalorder %s82, %s83
      %p95 = scmp.eq.s32.totalorder %s26, 1
      %p96 = por %p94, %p95
      %p98 = scmp.ne.s32.totalorder %s83, %s97
      %p99 = scmp.eq.s32.totalorder %s26, 0
      %p100 = por %p98, %p99
      %s102 = sadd.s32 %s101, 1
      %p105 = scmp.eq.s32.totalorder %s20, 1
      %p106 = scmp.ne.s32.totalorder %s101, %s103
      %p107 = scmp.eq.s32.totalorder %s20, 0
      %p108 = por %p106, %p107
      %p109 = scmp.ne.s32.totalorder %s101, %s103
      %p110 = scmp.eq.s32.totalorder %s25, 1
      %p111 = por %p109, %p110
      %p112 = scmp.ne.s32.totalorder %s103, %s104
      %p113 = scmp.eq.s32.totalorder %s25, 0
      %p114 = por %p112, %p113
      %p115 = scmp.ne.s32.totalorder %s103, %s104
      %p116 = scmp.eq.s32.totalorder %s26, 1
      %p117 = por %p115, %p116
      %p119 = scmp.ne.s32.totalorder %s104, %s118
      %p120 = scmp.eq.s32.totalorder %s26, 0
      %p121 = por %p119, %p120
      %s123 = sadd.s32 %s122, 1
      %p126 = scmp.eq.s32.totalorder %s20, 1
      %p127 = scmp.ne.s32.totalorder %s122, %s124
      %p128 = scmp.eq.s32.totalorder %s20, 0
      %p129 = por %p127, %p128
      %p130 = scmp.ne.s32.totalorder %s122, %s124
      %p131 = scmp.eq.s32.totalorder %s25, 1
      %p132 = por %p130, %p131
      %p133 = scmp.ne.s32.totalorder %s124, %s125
      %p134 = scmp.eq.s32.totalorder %s25, 0
      %p135 = por %p133, %p134
      %p136 = scmp.ne.s32.totalorder %s124, %s125
      %p137 = scmp.eq.s32.totalorder %s26, 1
      %p138 = por %p136, %p137
      %p140 = scmp.ne.s32.totalorder %s125, %s139
      %p141 = scmp.eq.s32.totalorder %s26, 0
      %p142 = por %p140, %p141
      %s144 = sadd.s32 %s143, 1
      %p147 = scmp.eq.s32.totalorder %s20, 1
      %p148 = scmp.ne.s32.totalorder %s143, %s145
      %p149 = scmp.eq.s32.totalorder %s20, 0
      %p150 = por %p148, %p149
      %p151 = scmp.ne.s32.totalorder %s143, %s145
      %p152 = scmp.eq.s32.totalorder %s25, 1
      %p153 = por %p151, %p152
      %p154 = scmp.ne.s32.totalorder %s145, %s146
      %p155 = scmp.eq.s32.totalorder %s25, 0
      %p156 = por %p154, %p155
      %p157 = scmp.ne.s32.totalorder %s145, %s146
      %p158 = scmp.eq.s32.totalorder %s26, 1
      %p159 = por %p157, %p158
      %p161 = scmp.ne.s32.totalorder %s146, %s160
      %p162 = scmp.eq.s32.totalorder %s26, 0
      %p163 = por %p161, %p162
      %s165 = sadd.s32 %s164, 1
      %p168 = scmp.eq.s32.totalorder %s20, 1
      %p169 = scmp.ne.s32.totalorder %s164, %s166
      %p170 = scmp.eq.s32.totalorder %s20, 0
      %p171 = por %p169, %p170
      %p172 = scmp.ne.s32.totalorder %s164, %s166
      %p173 = scmp.eq.s32.totalorder %s25, 1
      %p174 = por %p172, %p173
      %p175 = scmp.ne.s32.totalorder %s166, %s167
      %p176 = scmp.eq.s32.totalorder %s25, 0
      %p177 = por %p175, %p176
      %p178 = scmp.ne.s32.totalorder %s166, %s167
      %p179 = scmp.eq.s32.totalorder %s26, 1
      %p180 = por %p178, %p179
      %p182 = scmp.ne.s32.totalorder %s167, %s181
      %p183 = scmp.eq.s32.totalorder %s26, 0
      %p184 = por %p182, %p183
      %s186 = sadd.s32 %s185, 1
      %p189 = scmp.eq.s32.totalorder %s20, 1
      %p190 = scmp.ne.s32.totalorder %s185, %s187
      %p191 = scmp.eq.s32.totalorder %s20, 0
      %p192 = por %p190, %p191
      %p193 = scmp.ne.s32.totalorder %s185, %s187
      %p194 = scmp.eq.s32.totalorder %s25, 1
      %p195 = por %p193, %p194
      %p196 = scmp.ne.s32.totalorder %s187, %s188
      %p197 = scmp.eq.s32.totalorder %s25, 0
      %p198 = por %p196, %p197
      %p199 = scmp.ne.s32.totalorder %s187, %s188
      %p200 = scmp.eq.s32.totalorder %s26, 1
      %p201 = por %p199, %p200
      %p203 = scmp.ne.s32.totalorder %s188, %s202
      %p204 = scmp.eq.s32.totalorder %s26, 0
      %p205 = por %p203, %p204
      %s206 = ssub.s32 %s20, %s27
      %p207 = scmp.eq.s32.totalorder %s206, 0
      %s209 = sadd.s32 %s208, 1
      %s210 = scalar_select %p207, %s208, %s209
      %p213 = pneg %p207
      %p214 = scmp.eq.s32.totalorder %s20, 1
      %p215 = por %p213, %p214
      %p216 = scmp.ne.s32.totalorder %s208, %s211
      %p217 = scmp.eq.s32.totalorder %s20, 0
      %p218 = por %p216, %p217
      %p219 = scmp.ne.s32.totalorder %s208, %s211
      %p220 = scmp.eq.s32.totalorder %s25, 1
      %p221 = por %p219, %p220
      %p222 = scmp.ne.s32.totalorder %s211, %s212
      %p223 = scmp.eq.s32.totalorder %s25, 0
      %p224 = por %p222, %p223
      %p225 = scmp.ne.s32.totalorder %s211, %s212
      %p226 = scmp.eq.s32.totalorder %s26, 1
      %p227 = por %p225, %p226
      %p229 = scmp.ne.s32.totalorder %s212, %s228
      %p230 = scmp.eq.s32.totalorder %s26, 0
      %p231 = por %p229, %p230
      %s233 = sadd.s32 %s232, 1
      %p236 = scmp.eq.s32.totalorder %s20, 1
      %p237 = scmp.ne.s32.totalorder %s232, %s234
      %p238 = scmp.eq.s32.totalorder %s20, 0
      %p239 = por %p237, %p238
      %p240 = scmp.ne.s32.totalorder %s232, %s234
      %p241 = scmp.eq.s32.totalorder %s25, 1
      %p242 = por %p240, %p241
      %p243 = scmp.ne.s32.totalorder %s234, %s235
      %p244 = scmp.eq.s32.totalorder %s25, 0
      %p245 = por %p243, %p244
      %p246 = scmp.ne.s32.totalorder %s234, %s235
      %p247 = scmp.eq.s32.totalorder %s26, 1
      %p248 = por %p246, %p247
      %p250 = scmp.ne.s32.totalorder %s235, %s249
      %p251 = scmp.eq.s32.totalorder %s26, 0
      %p252 = por %p250, %p251
      %p253 = scmp.le.s32.totalorder 1, %s20
      %p254 = scmp.lt.s32.totalorder %s20, 3
      %p255 = pnand %p253, %p254
      %p256 = pneg %p255
      // Predicated region
      $region9: #{tpu_custom_call.1} parent=5 // pred_check
        _
      $region10: #{tpu_custom_call.1} parent=5 // pred_check_branch
        %258 = sbr.rel (%p255) target = $region12
      $region11: #{tpu_custom_call.1} parent=5 // pred_region
        %s259 = ssub.s32 %s20, 1
        // Predicated region
        $region13: #{tpu_custom_call.1} parent=11 // pred_check
          %p260 = pneg %p93
        $region14: #{tpu_custom_call.1} parent=11 // pred_check_branch
          %262 = sbr.rel (%p260) target = $region16
        $region15: #{tpu_custom_call.1} parent=11 // pred_region
          _
        $region16: #{tpu_custom_call.1} parent=11 // pred_fallthru
          _
        // Predicated region
        $region17: #{tpu_custom_call.1} parent=11 // pred_check
          %p263 = pneg %p114
        $region18: #{tpu_custom_call.1} parent=11 // pred_check_branch
          %265 = sbr.rel (%p263) target = $region20
        $region19: #{tpu_custom_call.1} parent=11 // pred_region
          _
        $region20: #{tpu_custom_call.1} parent=11 // pred_fallthru
          _
        // Predicated region
        $region21: #{tpu_custom_call.1} parent=11 // pred_check
          %p266 = pneg %p135
        $region22: #{tpu_custom_call.1} parent=11 // pred_check_branch
          %268 = sbr.rel (%p266) target = $region24
        $region23: #{tpu_custom_call.1} parent=11 // pred_region
          _
        $region24: #{tpu_custom_call.1} parent=11 // pred_fallthru
          _
        // Predicated region
        $region25: #{tpu_custom_call.1} parent=11 // pred_check
          %p269 = pneg %p156
        $region26: #{tpu_custom_call.1} parent=11 // pred_check_branch
          %271 = sbr.rel (%p269) target = $region28
        $region27: #{tpu_custom_call.1} parent=11 // pred_region
          _
        $region28: #{tpu_custom_call.1} parent=11 // pred_fallthru
          _
        // Predicated region
        $region29: #{tpu_custom_call.1} parent=11 // pred_check
          %p272 = pneg %p177
        $region30: #{tpu_custom_call.1} parent=11 // pred_check_branch
          %274 = sbr.rel (%p272) target = $region32
        $region31: #{tpu_custom_call.1} parent=11 // pred_region
          _
        $region32: #{tpu_custom_call.1} parent=11 // pred_fallthru
          _
        // Predicated region
        $region33: #{tpu_custom_call.1} parent=11 // pred_check
          %p275 = pneg %p198
        $region34: #{tpu_custom_call.1} parent=11 // pred_check_branch
          %277 = sbr.rel (%p275) target = $region36
        $region35: #{tpu_custom_call.1} parent=11 // pred_region
          _
        $region36: #{tpu_custom_call.1} parent=11 // pred_fallthru
          _
      $region12: #{tpu_custom_call.1} parent=5 // pred_fallthru
        _
      %p278 = scmp.lt.s32.totalorder %s20, 2
      // Predicated region
      $region37: #{tpu_custom_call.1} parent=5 // pred_check
        %p279 = pneg %p278
      $region38: #{tpu_custom_call.1} parent=5 // pred_check_branch
        %281 = sbr.rel (%p279) target = $region40
      $region39: #{tpu_custom_call.1} parent=5 // pred_region
        // Predicated region
        $region41: #{tpu_custom_call.1} parent=39 // pred_check
          %p282 = pneg %p40
        $region42: #{tpu_custom_call.1} parent=39 // pred_check_branch
          %284 = sbr.rel (%p282) target = $region44
        $region43: #{tpu_custom_call.1} parent=39 // pred_region
          %s285 = smul.u32 16, %s20
          %p286 = scmp.lt.s32.totalorder %s285, 31
          %s287 = scalar_select %p286, %s285, 31
          %s288 = smul.addr %s287, 8
          %s289 = scalar_lea.vmem %s0, %s288
          %s290 = smul.u32 16, %s20
        $region44: #{tpu_custom_call.1} parent=39 // pred_fallthru
          _
        // Predicated region
        $region45: #{tpu_custom_call.1} parent=39 // pred_check
          %p291 = pneg %p66
        $region46: #{tpu_custom_call.1} parent=39 // pred_check_branch
          %293 = sbr.rel (%p291) target = $region48
        $region47: #{tpu_custom_call.1} parent=39 // pred_region
          %s294 = smul.u32 16, %s20
          %p295 = scmp.lt.s32.totalorder %s294, 31
          %s296 = scalar_select %p295, %s294, 31
          %s297 = smul.addr %s296, 8
          %s298 = scalar_lea.vmem %s1, %s297
          %s299 = smul.u32 16, %s20
        $region48: #{tpu_custom_call.1} parent=39 // pred_fallthru
          _
      $region40: #{tpu_custom_call.1} parent=5 // pred_fallthru
        _
      %p300 = scmp.le.s32.totalorder 1, %s20
      %p301 = scmp.lt.s32.totalorder %s20, 3
      %p302 = pnand %p300, %p301
      %p303 = pneg %p302
      // Predicated region
      $region49: #{tpu_custom_call.1} parent=5 // pred_check
        _
      $region50: #{tpu_custom_call.1} parent=5 // pred_check_branch
        %305 = sbr.rel (%p302) target = $region52
      $region51: #{tpu_custom_call.1} parent=5 // pred_region
        %s306 = ssub.s32 %s20, 1
        %s307 = smul.u32 16, %s25
        %p308 = scmp.lt.s32.totalorder %s307, 31
        %s309 = scalar_select %p308, %s307, 31
        %s310 = smul.addr %s309, 8
        %s311 = scalar_lea.vmem %s0, %s310
        %p312 = pneg %p46
        %p313 = pneg %p43
        %s314 = smul.u32 16, %s25
        %p315 = scmp.lt.s32.totalorder %s314, 31
        %s316 = scalar_select %p315, %s314, 31
        %s317 = smul.addr %s316, 8
        %s318 = scalar_lea.vmem %s1, %s317
        %p319 = pneg %p72
        %p320 = pneg %p69
        %p321 = pneg %p93
        %p322 = pneg %p90
        %p323 = pneg %p114
        %p324 = pneg %p111
        %p325 = pneg %p135
        %p326 = pneg %p132
        %p327 = pneg %p156
        %p328 = pneg %p153
        %p329 = pneg %p177
        %p330 = pneg %p174
        %p331 = pneg %p198
        %p332 = pneg %p195
        %p333 = pneg %p224
        %p334 = pneg %p221
        %s335 = sand.u32 %s211, 1
        %s336 = scalar_lea.sflag [#allocation4], %s335
        %s337 = sand.u32 %s211, 1
        %s338 = smul.addr %s337, 128
        %s339 = scalar_lea.vmem [#allocation3], %s338
        %p340 = pneg %p245
        %p341 = pneg %p242
        %s342 = smul.u32 16, %s25
        %p343 = scmp.lt.s32.totalorder %s342, 31
        %s344 = scalar_select %p343, %s342, 31
        %s345 = smul.addr %s344, 8
        %s346 = scalar_lea.vmem %s0, %s345
        %s347 = smul.u32 16, %s25
        %s348 = smul.u32 16, %s25
        %p349 = scmp.lt.s32.totalorder %s348, 31
        %s350 = scalar_select %p349, %s348, 31
        %s351 = smul.addr %s350, 8
        %s352 = scalar_lea.vmem %s1, %s351
        %s353 = smul.u32 16, %s25
        %s354 = smul.u32 16, %s25
        %v356 = vld [vmem:[%s5] sm:$0xff]
        %p357 = scmp.eq.s32.totalorder %s25, 0
        // Predicated region
        $region53: #{tpu_custom_call.1} parent=51 // pred_check
          %p358 = pneg %p357
        $region54: #{tpu_custom_call.1} parent=51 // pred_check_branch
          %360 = sbr.rel (%p358) target = $region56
        $region55: #{tpu_custom_call.1} parent=51 // pred_region
          %361 = vst [vmem:[#allocation2] sm:$0xff] 0.0
        $region56: #{tpu_custom_call.1} parent=51 // pred_fallthru
          _
        %v362 = vld [vmem:[%s346] sm:$0xff]
        %v363 = vld [vmem:[%s346 + $0x8] sm:$0xff]
        %v364 = vld [vmem:[%s346 + $0x10] sm:$0xff]
        %v365 = vld [vmem:[%s346 + $0x18] sm:$0xff]
        %v366 = vld [vmem:[%s346 + $0x20] sm:$0xff]
        %v367 = vld [vmem:[%s346 + $0x28] sm:$0xff]
        %v368 = vld [vmem:[%s346 + $0x30] sm:$0xff]
        %v369 = vld [vmem:[%s346 + $0x38] sm:$0xff]
        %v370 = vld [vmem:[%s346 + $0x40] sm:$0xff]
        %v371 = vld [vmem:[%s346 + $0x48] sm:$0xff]
        %v372 = vld [vmem:[%s346 + $0x50] sm:$0xff]
        %v373 = vld [vmem:[%s346 + $0x58] sm:$0xff]
        %v374 = vld [vmem:[%s346 + $0x60] sm:$0xff]
        %v375 = vld [vmem:[%s346 + $0x68] sm:$0xff]
        %v376 = vld [vmem:[%s346 + $0x70] sm:$0xff]
        %v377 = vld [vmem:[%s346 + $0x78] sm:$0xff]
        %v378 = vld [vmem:[%s352] sm:$0xff]
        %v379 = vld [vmem:[%s352 + $0x8] sm:$0xff]
        %v380 = vld [vmem:[%s352 + $0x10] sm:$0xff]
        %v381 = vld [vmem:[%s352 + $0x18] sm:$0xff]
        %v382 = vld [vmem:[%s352 + $0x20] sm:$0xff]
        %v383 = vld [vmem:[%s352 + $0x28] sm:$0xff]
        %v384 = vld [vmem:[%s352 + $0x30] sm:$0xff]
        %v385 = vld [vmem:[%s352 + $0x38] sm:$0xff]
        %v386 = vld [vmem:[%s352 + $0x40] sm:$0xff]
        %v387 = vld [vmem:[%s352 + $0x48] sm:$0xff]
        %v388 = vld [vmem:[%s352 + $0x50] sm:$0xff]
        %v389 = vld [vmem:[%s352 + $0x58] sm:$0xff]
        %v390 = vld [vmem:[%s352 + $0x60] sm:$0xff]
        %v391 = vld [vmem:[%s352 + $0x68] sm:$0xff]
        %v392 = vld [vmem:[%s352 + $0x70] sm:$0xff]
        %v393 = vld [vmem:[%s352 + $0x78] sm:$0xff]
        %v394 = vlaneseq
        %v395 = vand.u32 %v394, 127
        %396 = vset.pattern.permute.xlu0 0
        %397 = vperm.xlu0 %396, %v362
        %v398 = vpop.permute.xlu0 %397
        %399 = vset.pattern.permute.xlu0 0
        %400 = vperm.xlu0 %399, %v363
        %v401 = vpop.permute.xlu0 %400
        %402 = vset.pattern.permute.xlu0 0
        %403 = vperm.xlu0 %402, %v364
        %v404 = vpop.permute.xlu0 %403
        %405 = vset.pattern.permute.xlu0 0
        %406 = vperm.xlu0 %405, %v365
        %v407 = vpop.permute.xlu0 %406
        %408 = vset.pattern.permute.xlu0 0
        %409 = vperm.xlu0 %408, %v366
        %v410 = vpop.permute.xlu0 %409
        %411 = vset.pattern.permute.xlu0 0
        %412 = vperm.xlu0 %411, %v367
        %v413 = vpop.permute.xlu0 %412
        %414 = vset.pattern.permute.xlu0 0
        %415 = vperm.xlu0 %414, %v368
        %v416 = vpop.permute.xlu0 %415
        %417 = vset.pattern.permute.xlu0 0
        %418 = vperm.xlu0 %417, %v369
        %v419 = vpop.permute.xlu0 %418
        %420 = vset.pattern.permute.xlu0 0
        %421 = vperm.xlu0 %420, %v370
        %v422 = vpop.permute.xlu0 %421
        %423 = vset.pattern.permute.xlu0 0
        %424 = vperm.xlu0 %423, %v371
        %v425 = vpop.permute.xlu0 %424
        %426 = vset.pattern.permute.xlu0 0
        %427 = vperm.xlu0 %426, %v372
        %v428 = vpop.permute.xlu0 %427
        %429 = vset.pattern.permute.xlu0 0
        %430 = vperm.xlu0 %429, %v373
        %v431 = vpop.permute.xlu0 %430
        %432 = vset.pattern.permute.xlu0 0
        %433 = vperm.xlu0 %432, %v374
        %v434 = vpop.permute.xlu0 %433
        %435 = vset.pattern.permute.xlu0 0
        %436 = vperm.xlu0 %435, %v375
        %v437 = vpop.permute.xlu0 %436
        %438 = vset.pattern.permute.xlu0 0
        %439 = vperm.xlu0 %438, %v376
        %v440 = vpop.permute.xlu0 %439
        %441 = vset.pattern.permute.xlu0 0
        %442 = vperm.xlu0 %441, %v377
        %v443 = vpop.permute.xlu0 %442
        %vm444 = vcmp.eq.s32.totalorder %v395, %v398
        %vm445 = vcmp.eq.s32.totalorder %v395, %v401
        %vm446 = vcmp.eq.s32.totalorder %v395, %v404
        %vm447 = vcmp.eq.s32.totalorder %v395, %v407
        %vm448 = vcmp.eq.s32.totalorder %v395, %v410
        %vm449 = vcmp.eq.s32.totalorder %v395, %v413
        %vm450 = vcmp.eq.s32.totalorder %v395, %v416
        %vm451 = vcmp.eq.s32.totalorder %v395, %v419
        %vm452 = vcmp.eq.s32.totalorder %v395, %v422
        %vm453 = vcmp.eq.s32.totalorder %v395, %v425
        %vm454 = vcmp.eq.s32.totalorder %v395, %v428
        %vm455 = vcmp.eq.s32.totalorder %v395, %v431
        %vm456 = vcmp.eq.s32.totalorder %v395, %v434
        %vm457 = vcmp.eq.s32.totalorder %v395, %v437
        %vm458 = vcmp.eq.s32.totalorder %v395, %v440
        %vm459 = vcmp.eq.s32.totalorder %v395, %v443
        %v460 = vsel %vm444, 1, 0
        %v461 = vsel %vm445, 1, 0
        %v462 = vsel %vm446, 1, 0
        %v463 = vsel %vm447, 1, 0
        %v464 = vsel %vm448, 1, 0
        %v465 = vsel %vm449, 1, 0
        %v466 = vsel %vm450, 1, 0
        %v467 = vsel %vm451, 1, 0
        %v468 = vsel %vm452, 1, 0
        %v469 = vsel %vm453, 1, 0
        %v470 = vsel %vm454, 1, 0
        %v471 = vsel %vm455, 1, 0
        %v472 = vsel %vm456, 1, 0
        %v473 = vsel %vm457, 1, 0
        %v474 = vsel %vm458, 1, 0
        %v475 = vsel %vm459, 1, 0
        %v476 = vcvt.s32.f32 %v460
        %v477 = vcvt.s32.f32 %v461
        %v478 = vcvt.s32.f32 %v462
        %v479 = vcvt.s32.f32 %v463
        %v480 = vcvt.s32.f32 %v464
        %v481 = vcvt.s32.f32 %v465
        %v482 = vcvt.s32.f32 %v466
        %v483 = vcvt.s32.f32 %v467
        %v484 = vcvt.s32.f32 %v468
        %v485 = vcvt.s32.f32 %v469
        %v486 = vcvt.s32.f32 %v470
        %v487 = vcvt.s32.f32 %v471
        %v488 = vcvt.s32.f32 %v472
        %v489 = vcvt.s32.f32 %v473
        %v490 = vcvt.s32.f32 %v474
        %v491 = vcvt.s32.f32 %v475
        %492 = vset.pattern.permute.xlu0 0
        %493 = vperm.xlu0 %492, %v378
        %v494 = vpop.permute.xlu0 %493
        %495 = vset.pattern.permute.xlu0 0
        %496 = vperm.xlu0 %495, %v379
        %v497 = vpop.permute.xlu0 %496
        %498 = vset.pattern.permute.xlu0 0
        %499 = vperm.xlu0 %498, %v380
        %v500 = vpop.permute.xlu0 %499
        %501 = vset.pattern.permute.xlu0 0
        %502 = vperm.xlu0 %501, %v381
        %v503 = vpop.permute.xlu0 %502
        %504 = vset.pattern.permute.xlu0 0
        %505 = vperm.xlu0 %504, %v382
        %v506 = vpop.permute.xlu0 %505
        %507 = vset.pattern.permute.xlu0 0
        %508 = vperm.xlu0 %507, %v383
        %v509 = vpop.permute.xlu0 %508
        %510 = vset.pattern.permute.xlu0 0
        %511 = vperm.xlu0 %510, %v384
        %v512 = vpop.permute.xlu0 %511
        %513 = vset.pattern.permute.xlu0 0
        %514 = vperm.xlu0 %513, %v385
        %v515 = vpop.permute.xlu0 %514
        %516 = vset.pattern.permute.xlu0 0
        %517 = vperm.xlu0 %516, %v386
        %v518 = vpop.permute.xlu0 %517
        %519 = vset.pattern.permute.xlu0 0
        %520 = vperm.xlu0 %519, %v387
        %v521 = vpop.permute.xlu0 %520
        %522 = vset.pattern.permute.xlu0 0
        %523 = vperm.xlu0 %522, %v388
        %v524 = vpop.permute.xlu0 %523
        %525 = vset.pattern.permute.xlu0 0
        %526 = vperm.xlu0 %525, %v389
        %v527 = vpop.permute.xlu0 %526
        %528 = vset.pattern.permute.xlu0 0
        %529 = vperm.xlu0 %528, %v390
        %v530 = vpop.permute.xlu0 %529
        %531 = vset.pattern.permute.xlu0 0
        %532 = vperm.xlu0 %531, %v391
        %v533 = vpop.permute.xlu0 %532
        %534 = vset.pattern.permute.xlu0 0
        %535 = vperm.xlu0 %534, %v392
        %v536 = vpop.permute.xlu0 %535
        %537 = vset.pattern.permute.xlu0 0
        %538 = vperm.xlu0 %537, %v393
        %v539 = vpop.permute.xlu0 %538
        %vm540 = vcmp.eq.s32.totalorder %v395, %v494
        %vm541 = vcmp.eq.s32.totalorder %v395, %v497
        %vm542 = vcmp.eq.s32.totalorder %v395, %v500
        %vm543 = vcmp.eq.s32.totalorder %v395, %v503
        %vm544 = vcmp.eq.s32.totalorder %v395, %v506
        %vm545 = vcmp.eq.s32.totalorder %v395, %v509
        %vm546 = vcmp.eq.s32.totalorder %v395, %v512
        %vm547 = vcmp.eq.s32.totalorder %v395, %v515
        %vm548 = vcmp.eq.s32.totalorder %v395, %v518
        %vm549 = vcmp.eq.s32.totalorder %v395, %v521
        %vm550 = vcmp.eq.s32.totalorder %v395, %v524
        %vm551 = vcmp.eq.s32.totalorder %v395, %v527
        %vm552 = vcmp.eq.s32.totalorder %v395, %v530
        %vm553 = vcmp.eq.s32.totalorder %v395, %v533
        %vm554 = vcmp.eq.s32.totalorder %v395, %v536
        %vm555 = vcmp.eq.s32.totalorder %v395, %v539
        %v556 = vsel %vm540, 1, 0
        %v557 = vsel %vm541, 1, 0
        %v558 = vsel %vm542, 1, 0
        %v559 = vsel %vm543, 1, 0
        %v560 = vsel %vm544, 1, 0
        %v561 = vsel %vm545, 1, 0
        %v562 = vsel %vm546, 1, 0
        %v563 = vsel %vm547, 1, 0
        %v564 = vsel %vm548, 1, 0
        %v565 = vsel %vm549, 1, 0
        %v566 = vsel %vm550, 1, 0
        %v567 = vsel %vm551, 1, 0
        %v568 = vsel %vm552, 1, 0
        %v569 = vsel %vm553, 1, 0
        %v570 = vsel %vm554, 1, 0
        %v571 = vsel %vm555, 1, 0
        %v572 = vcvt.s32.f32 %v556
        %v573 = vcvt.s32.f32 %v557
        %v574 = vcvt.s32.f32 %v558
        %v575 = vcvt.s32.f32 %v559
        %v576 = vcvt.s32.f32 %v560
        %v577 = vcvt.s32.f32 %v561
        %v578 = vcvt.s32.f32 %v562
        %v579 = vcvt.s32.f32 %v563
        %v580 = vcvt.s32.f32 %v564
        %v581 = vcvt.s32.f32 %v565
        %v582 = vcvt.s32.f32 %v566
        %v583 = vcvt.s32.f32 %v567
        %v584 = vcvt.s32.f32 %v568
        %v585 = vcvt.s32.f32 %v569
        %v586 = vcvt.s32.f32 %v570
        %v587 = vcvt.s32.f32 %v571
        %v588 = vld [vmem:[%s2] sm:$0xff]
        %v589 = vld [vmem:[%s2 + $0x8] sm:$0xff]
        %v590 = vld [vmem:[%s2 + $0x10] sm:$0xff]
        %v591 = vld [vmem:[%s2 + $0x18] sm:$0xff]
        %v592 = vld [vmem:[%s2 + $0x20] sm:$0xff]
        %v593 = vld [vmem:[%s2 + $0x28] sm:$0xff]
        %v594 = vld [vmem:[%s2 + $0x30] sm:$0xff]
        %v595 = vld [vmem:[%s2 + $0x38] sm:$0xff]
        %v596 = vld [vmem:[%s3] sm:$0xff]
        %vm597 = vcmask 64512
        %v599 = vsel %vm597, %v572, 0
        %v602 = vsel %vm597, %v573, 0
        %v605 = vsel %vm597, %v574, 0
        %v608 = vsel %vm597, %v575, 0
        %v611 = vsel %vm597, %v576, 0
        %v614 = vsel %vm597, %v577, 0
        %v617 = vsel %vm597, %v578, 0
        %v620 = vsel %vm597, %v579, 0
        %v623 = vsel %vm597, %v580, 0
        %v626 = vsel %vm597, %v581, 0
        %v629 = vsel %vm597, %v582, 0
        %v632 = vsel %vm597, %v583, 0
        %v635 = vsel %vm597, %v584, 0
        %v638 = vsel %vm597, %v585, 0
        %v641 = vsel %vm597, %v586, 0
        %v644 = vsel %vm597, %v587, 0
        %646 = vmatprep.subr.mxu0 0.0
        %647 = vmatpush1.msra.mxu0 %v596
        %648 = vmatprep.subr.mxu0 0.0
        %649 = vmatpush1.msra.mxu0 0.0
        %650 = vmatprep.subr.mxu0 0.0
        %651 = vmatpush1.msra.mxu0 0.0
        %652 = vmatprep.subr.mxu0 0.0
        %653 = vmatpush1.msra.mxu0 0.0
        %654 = vmatprep.subr.mxu0 0.0
        %655 = vmatpush1.msra.mxu0 0.0
        %656 = vmatprep.subr.mxu0 0.0
        %657 = vmatpush1.msra.mxu0 0.0
        %658 = vmatprep.subr.mxu0 0.0
        %659 = vmatpush1.msra.mxu0 0.0
        %660 = vmatprep.subr.mxu0 0.0
        %661 = vmatpush1.msra.mxu0 0.0
        %662 = vmatprep.subr.mxu0 0.0
        %663 = vmatpush1.msra.mxu0 0.0
        %664 = vmatprep.subr.mxu0 0.0
        %665 = vmatpush1.msra.mxu0 0.0
        %666 = vmatprep.subr.mxu0 0.0
        %667 = vmatpush1.msra.mxu0 0.0
        %668 = vmatprep.subr.mxu0 0.0
        %669 = vmatpush1.msra.mxu0 0.0
        %670 = vmatprep.subr.mxu0 0.0
        %671 = vmatpush1.msra.mxu0 0.0
        %672 = vmatprep.subr.mxu0 0.0
        %673 = vmatpush1.msra.mxu0 0.0
        %674 = vmatprep.subr.mxu0 0.0
        %675 = vmatpush1.msra.mxu0 0.0
        %676 = vmatprep.subr.mxu0 0.0
        %677 = vmatpush1.msra.mxu0 0.0
        %678 = vmatprep.subr.mxu0 0.0
        %679 = vmatpush1.msra.mxu0 0.0
        %680 = vmatprep.subr.mxu0 0.0
        %681 = vmatpush1.msra.mxu0 0.0
        %682 = vmatprep.subr.mxu0 0.0
        %683 = vmatpush1.msra.mxu0 0.0
        %684 = vmatprep.subr.mxu0 0.0
        %685 = vmatpush1.msra.mxu0 0.0
        %686 = vmatprep.subr.mxu0 0.0
        %687 = vmatpush1.msra.mxu0 0.0
        %688 = vmatprep.subr.mxu0 0.0
        %689 = vmatpush1.msra.mxu0 0.0
        %690 = vmatprep.subr.mxu0 0.0
        %691 = vmatpush1.msra.mxu0 0.0
        %692 = vmatprep.subr.mxu0 0.0
        %693 = vmatpush1.msra.mxu0 0.0
        %694 = vmatprep.subr.mxu0 0.0
        %695 = vmatpush1.msra.mxu0 0.0
        %696 = vmatprep.subr.mxu0 0.0
        %697 = vmatpush1.msra.mxu0 0.0
        %698 = vmatprep.subr.mxu0 0.0
        %699 = vmatpush1.msra.mxu0 0.0
        %700 = vmatprep.subr.mxu0 0.0
        %701 = vmatpush1.msra.mxu0 0.0
        %702 = vmatprep.subr.mxu0 0.0
        %703 = vmatpush1.msra.mxu0 0.0
        %704 = vmatprep.subr.mxu0 0.0
        %705 = vmatpush1.msra.mxu0 0.0
        %706 = vmatprep.subr.mxu0 0.0
        %707 = vmatpush1.msra.mxu0 0.0
        %708 = vmatprep.subr.mxu0 0.0
        %709 = vmatpush1.msra.mxu0 0.0
        %710 = vmatprep.mubr.f32.mxu0 0.0
        %711 = vmatmul.mubr.f32.gmra.mrb[0].mxu0 %v599
        %v712 = vpop.f32.mrb[0].mxu0
        %v713 = vadd.f32 0.0, %v712
        %v714 = vpop.f32.mrb[0].mxu0
        %715 = vmatprep.mubr.f32.mxu0 0.0
        %716 = vmatmul.mubr.f32.gmra.mrb[0].mxu0 %v602
        %v717 = vpop.f32.mrb[0].mxu0
        %v718 = vadd.f32 0.0, %v717
        %v719 = vpop.f32.mrb[0].mxu0
        %720 = vmatprep.mubr.f32.mxu0 0.0
        %721 = vmatmul.mubr.f32.gmra.mrb[0].mxu0 %v605
        %v722 = vpop.f32.mrb[0].mxu0
        %v723 = vadd.f32 0.0, %v722
        %v724 = vpop.f32.mrb[0].mxu0
        %725 = vmatprep.mubr.f32.mxu0 0.0
        %726 = vmatmul.mubr.f32.gmra.mrb[0].mxu0 %v608
        %v727 = vpop.f32.mrb[0].mxu0
        %v728 = vadd.f32 0.0, %v727
        %v729 = vpop.f32.mrb[0].mxu0
        %730 = vmatprep.mubr.f32.mxu0 0.0
        %731 = vmatmul.mubr.f32.gmra.mrb[0].mxu0 %v611
        %v732 = vpop.f32.mrb[0].mxu0
        %v733 = vadd.f32 0.0, %v732
        %v734 = vpop.f32.mrb[0].mxu0
        %735 = vmatprep.mubr.f32.mxu0 0.0
        %736 = vmatmul.mubr.f32.gmra.mrb[0].mxu0 %v614
        %v737 = vpop.f32.mrb[0].mxu0
        %v738 = vadd.f32 0.0, %v737
        %v739 = vpop.f32.mrb[0].mxu0
        %740 = vmatprep.mubr.f32.mxu0 0.0
        %741 = vmatmul.mubr.f32.gmra.mrb[0].mxu0 %v617
        %v742 = vpop.f32.mrb[0].mxu0
        %v743 = vadd.f32 0.0, %v742
        %v744 = vpop.f32.mrb[0].mxu0
        %745 = vmatprep.mubr.f32.mxu0 0.0
        %746 = vmatmul.mubr.f32.gmra.mrb[0].mxu0 %v620
        %v747 = vpop.f32.mrb[0].mxu0
        %v748 = vadd.f32 0.0, %v747
        %v749 = vpop.f32.mrb[0].mxu0
        %750 = vmatprep.mubr.f32.mxu0 0.0
        %751 = vmatmul.mubr.f32.gmra.mrb[0].mxu0 %v623
        %v752 = vpop.f32.mrb[0].mxu0
        %v753 = vadd.f32 0.0, %v752
        %v754 = vpop.f32.mrb[0].mxu0
        %755 = vmatprep.mubr.f32.mxu0 0.0
        %756 = vmatmul.mubr.f32.gmra.mrb[0].mxu0 %v626
        %v757 = vpop.f32.mrb[0].mxu0
        %v758 = vadd.f32 0.0, %v757
        %v759 = vpop.f32.mrb[0].mxu0
        %760 = vmatprep.mubr.f32.mxu0 0.0
        %761 = vmatmul.mubr.f32.gmra.mrb[0].mxu0 %v629
        %v762 = vpop.f32.mrb[0].mxu0
        %v763 = vadd.f32 0.0, %v762
        %v764 = vpop.f32.mrb[0].mxu0
        %765 = vmatprep.mubr.f32.mxu0 0.0
        %766 = vmatmul.mubr.f32.gmra.mrb[0].mxu0 %v632
        %v767 = vpop.f32.mrb[0].mxu0
        %v768 = vadd.f32 0.0, %v767
        %v769 = vpop.f32.mrb[0].mxu0
        %770 = vmatprep.mubr.f32.mxu0 0.0
        %771 = vmatmul.mubr.f32.gmra.mrb[0].mxu0 %v635
        %v772 = vpop.f32.mrb[0].mxu0
        %v773 = vadd.f32 0.0, %v772
        %v774 = vpop.f32.mrb[0].mxu0
        %775 = vmatprep.mubr.f32.mxu0 0.0
        %776 = vmatmul.mubr.f32.gmra.mrb[0].mxu0 %v638
        %v777 = vpop.f32.mrb[0].mxu0
        %v778 = vadd.f32 0.0, %v777
        %v779 = vpop.f32.mrb[0].mxu0
        %780 = vmatprep.mubr.f32.mxu0 0.0
        %781 = vmatmul.mubr.f32.gmra.mrb[0].mxu0 %v641
        %v782 = vpop.f32.mrb[0].mxu0
        %v783 = vadd.f32 0.0, %v782
        %v784 = vpop.f32.mrb[0].mxu0
        %785 = vmatprep.mubr.f32.mxu0 0.0
        %786 = vmatmul.mubr.f32.gmra.mrb[0].mxu0 %v644
        %v787 = vpop.f32.mrb[0].mxu0
        %v788 = vadd.f32 0.0, %v787
        %v789 = vpop.f32.mrb[0].mxu0
        %790 = vdwg.mxu0
        %vm791 = vcmask 523264
        %v793 = vsel %vm791, %v476, 0
        %v796 = vsel %vm791, %v477, 0
        %v799 = vsel %vm791, %v478, 0
        %v802 = vsel %vm791, %v479, 0
        %v805 = vsel %vm791, %v480, 0
        %v808 = vsel %vm791, %v481, 0
        %v811 = vsel %vm791, %v482, 0
        %v814 = vsel %vm791, %v483, 0
        %v817 = vsel %vm791, %v484, 0
        %v820 = vsel %vm791, %v485, 0
        %v823 = vsel %vm791, %v486, 0
        %v826 = vsel %vm791, %v487, 0
        %v829 = vsel %vm791, %v488, 0
        %v832 = vsel %vm791, %v489, 0
        %v835 = vsel %vm791, %v490, 0
        %v838 = vsel %vm791, %v491, 0
        %840 = vmatprep.subr.mxu0 0.0
        %841 = vmatpush1.msra.mxu0 %v588
        %842 = vmatprep.subr.mxu0 0.0
        %843 = vmatpush1.msra.mxu0 %v589
        %844 = vmatprep.subr.mxu0 0.0
        %845 = vmatpush1.msra.mxu0 %v590
        %846 = vmatprep.subr.mxu0 0.0
        %847 = vmatpush1.msra.mxu0 %v591
        %848 = vmatprep.subr.mxu0 0.0
        %849 = vmatpush1.msra.mxu0 %v592
        %850 = vmatprep.subr.mxu0 0.0
        %851 = vmatpush1.msra.mxu0 %v593
        %852 = vmatprep.subr.mxu0 0.0
        %853 = vmatpush1.msra.mxu0 %v594
        %854 = vmatprep.subr.mxu0 0.0
        %855 = vmatpush1.msra.mxu0 %v595
        %856 = vmatprep.subr.mxu0 0.0
        %857 = vmatpush1.msra.mxu0 0.0
        %858 = vmatprep.subr.mxu0 0.0
        %859 = vmatpush1.msra.mxu0 0.0
        %860 = vmatprep.subr.mxu0 0.0
        %861 = vmatpush1.msra.mxu0 0.0
        %862 = vmatprep.subr.mxu0 0.0
        %863 = vmatpush1.msra.mxu0 0.0
        %864 = vmatprep.subr.mxu0 0.0
        %865 = vmatpush1.msra.mxu0 0.0
        %866 = vmatprep.subr.mxu0 0.0
        %867 = vmatpush1.msra.mxu0 0.0
        %868 = vmatprep.subr.mxu0 0.0
        %869 = vmatpush1.msra.mxu0 0.0
        %870 = vmatprep.subr.mxu0 0.0
        %871 = vmatpush1.msra.mxu0 0.0
        %872 = vmatprep.subr.mxu0 0.0
        %873 = vmatpush1.msra.mxu0 0.0
        %874 = vmatprep.subr.mxu0 0.0
        %875 = vmatpush1.msra.mxu0 0.0
        %876 = vmatprep.subr.mxu0 0.0
        %877 = vmatpush1.msra.mxu0 0.0
        %878 = vmatprep.subr.mxu0 0.0
        %879 = vmatpush1.msra.mxu0 0.0
        %880 = vmatprep.subr.mxu0 0.0
        %881 = vmatpush1.msra.mxu0 0.0
        %882 = vmatprep.subr.mxu0 0.0
        %883 = vmatpush1.msra.mxu0 0.0
        %884 = vmatprep.subr.mxu0 0.0
        %885 = vmatpush1.msra.mxu0 0.0
        %886 = vmatprep.subr.mxu0 0.0
        %887 = vmatpush1.msra.mxu0 0.0
        %888 = vmatprep.subr.mxu0 0.0
        %889 = vmatpush1.msra.mxu0 0.0
        %890 = vmatprep.subr.mxu0 0.0
        %891 = vmatpush1.msra.mxu0 0.0
        %892 = vmatprep.subr.mxu0 0.0
        %893 = vmatpush1.msra.mxu0 0.0
        %894 = vmatprep.subr.mxu0 0.0
        %895 = vmatpush1.msra.mxu0 0.0
        %896 = vmatprep.subr.mxu0 0.0
        %897 = vmatpush1.msra.mxu0 0.0
        %898 = vmatprep.subr.mxu0 0.0
        %899 = vmatpush1.msra.mxu0 0.0
        %900 = vmatprep.subr.mxu0 0.0
        %901 = vmatpush1.msra.mxu0 0.0
        %902 = vmatprep.subr.mxu0 0.0
        %903 = vmatpush1.msra.mxu0 0.0
        %904 = vmatprep.mubr.f32.mxu0 0.0
        %905 = vmatmul.mubr.f32.gmra.mrb[0].mxu0 %v793
        %v906 = vpop.f32.mrb[0].mxu0
        %v907 = vadd.f32 %v713, %v906
        %v908 = vpop.f32.mrb[0].mxu0
        %909 = vmatprep.mubr.f32.mxu0 0.0
        %910 = vmatmul.mubr.f32.gmra.mrb[0].mxu0 %v796
        %v911 = vpop.f32.mrb[0].mxu0
        %v912 = vadd.f32 %v718, %v911
        %v913 = vpop.f32.mrb[0].mxu0
        %914 = vmatprep.mubr.f32.mxu0 0.0
        %915 = vmatmul.mubr.f32.gmra.mrb[0].mxu0 %v799
        %v916 = vpop.f32.mrb[0].mxu0
        %v917 = vadd.f32 %v723, %v916
        %v918 = vpop.f32.mrb[0].mxu0
        %919 = vmatprep.mubr.f32.mxu0 0.0
        %920 = vmatmul.mubr.f32.gmra.mrb[0].mxu0 %v802
        %v921 = vpop.f32.mrb[0].mxu0
        %v922 = vadd.f32 %v728, %v921
        %v923 = vpop.f32.mrb[0].mxu0
        %924 = vmatprep.mubr.f32.mxu0 0.0
        %925 = vmatmul.mubr.f32.gmra.mrb[0].mxu0 %v805
        %v926 = vpop.f32.mrb[0].mxu0
        %v927 = vadd.f32 %v733, %v926
        %v928 = vpop.f32.mrb[0].mxu0
        %929 = vmatprep.mubr.f32.mxu0 0.0
        %930 = vmatmul.mubr.f32.gmra.mrb[0].mxu0 %v808
        %v931 = vpop.f32.mrb[0].mxu0
        %v932 = vadd.f32 %v738, %v931
        %v933 = vpop.f32.mrb[0].mxu0
        %934 = vmatprep.mubr.f32.mxu0 0.0
        %935 = vmatmul.mubr.f32.gmra.mrb[0].mxu0 %v811
        %v936 = vpop.f32.mrb[0].mxu0
        %v937 = vadd.f32 %v743, %v936
        %v938 = vpop.f32.mrb[0].mxu0
        %939 = vmatprep.mubr.f32.mxu0 0.0
        %940 = vmatmul.mubr.f32.gmra.mrb[0].mxu0 %v814
        %v941 = vpop.f32.mrb[0].mxu0
        %v942 = vadd.f32 %v748, %v941
        %v943 = vpop.f32.mrb[0].mxu0
        %944 = vmatprep.mubr.f32.mxu0 0.0
        %945 = vmatmul.mubr.f32.gmra.mrb[0].mxu0 %v817
        %v946 = vpop.f32.mrb[0].mxu0
        %v947 = vadd.f32 %v753, %v946
        %v948 = vpop.f32.mrb[0].mxu0
        %949 = vmatprep.mubr.f32.mxu0 0.0
        %950 = vmatmul.mubr.f32.gmra.mrb[0].mxu0 %v820
        %v951 = vpop.f32.mrb[0].mxu0
        %v952 = vadd.f32 %v758, %v951
        %v953 = vpop.f32.mrb[0].mxu0
        %954 = vmatprep.mubr.f32.mxu0 0.0
        %955 = vmatmul.mubr.f32.gmra.mrb[0].mxu0 %v823
        %v956 = vpop.f32.mrb[0].mxu0
        %v957 = vadd.f32 %v763, %v956
        %v958 = vpop.f32.mrb[0].mxu0
        %959 = vmatprep.mubr.f32.mxu0 0.0
        %960 = vmatmul.mubr.f32.gmra.mrb[0].mxu0 %v826
        %v961 = vpop.f32.mrb[0].mxu0
        %v962 = vadd.f32 %v768, %v961
        %v963 = vpop.f32.mrb[0].mxu0
        %964 = vmatprep.mubr.f32.mxu0 0.0
        %965 = vmatmul.mubr.f32.gmra.mrb[0].mxu0 %v829
        %v966 = vpop.f32.mrb[0].mxu0
        %v967 = vadd.f32 %v773, %v966
        %v968 = vpop.f32.mrb[0].mxu0
        %969 = vmatprep.mubr.f32.mxu0 0.0
        %970 = vmatmul.mubr.f32.gmra.mrb[0].mxu0 %v832
        %v971 = vpop.f32.mrb[0].mxu0
        %v972 = vadd.f32 %v778, %v971
        %v973 = vpop.f32.mrb[0].mxu0
        %974 = vmatprep.mubr.f32.mxu0 0.0
        %975 = vmatmul.mubr.f32.gmra.mrb[0].mxu0 %v835
        %v976 = vpop.f32.mrb[0].mxu0
        %v977 = vadd.f32 %v783, %v976
        %v978 = vpop.f32.mrb[0].mxu0
        %979 = vmatprep.mubr.f32.mxu0 0.0
        %980 = vmatmul.mubr.f32.gmra.mrb[0].mxu0 %v838
        %v981 = vpop.f32.mrb[0].mxu0
        %v982 = vadd.f32 %v788, %v981
        %v983 = vpop.f32.mrb[0].mxu0
        %984 = vdwg.mxu0
        %v985 = vld [vmem:[%s4] sm:$0xff]
        %v986 = vld [vmem:[%s4 + $0x8] sm:$0xff]
        %v987 = vld [vmem:[%s4 + $0x10] sm:$0xff]
        %v988 = vld [vmem:[%s4 + $0x18] sm:$0xff]
        %v989 = vld [vmem:[%s4 + $0x20] sm:$0xff]
        %v990 = vld [vmem:[%s4 + $0x28] sm:$0xff]
        %v991 = vld [vmem:[%s4 + $0x30] sm:$0xff]
        %v992 = vld [vmem:[%s4 + $0x38] sm:$0xff]
        %v993 = vld [vmem:[%s4 + $0x40] sm:$0xff]
        %v994 = vld [vmem:[%s4 + $0x48] sm:$0xff]
        %v995 = vld [vmem:[%s4 + $0x50] sm:$0xff]
        %v996 = vld [vmem:[%s4 + $0x58] sm:$0xff]
        %v997 = vld [vmem:[%s4 + $0x60] sm:$0xff]
        %v998 = vld [vmem:[%s4 + $0x68] sm:$0xff]
        %v999 = vld [vmem:[%s4 + $0x70] sm:$0xff]
        %v1000 = vld [vmem:[%s4 + $0x78] sm:$0xff]
        %v1001 = vadd.f32 %v907, %v985
        %v1002 = vadd.f32 %v912, %v986
        %v1003 = vadd.f32 %v917, %v987
        %v1004 = vadd.f32 %v922, %v988
        %v1005 = vadd.f32 %v927, %v989
        %v1006 = vadd.f32 %v932, %v990
        %v1007 = vadd.f32 %v937, %v991
        %v1008 = vadd.f32 %v942, %v992
        %v1009 = vadd.f32 %v947, %v993
        %v1010 = vadd.f32 %v952, %v994
        %v1011 = vadd.f32 %v957, %v995
        %v1012 = vadd.f32 %v962, %v996
        %v1013 = vadd.f32 %v967, %v997
        %v1014 = vadd.f32 %v972, %v998
        %v1015 = vadd.f32 %v977, %v999
        %v1016 = vadd.f32 %v982, %v1000
        %1017 = vadd.xlane.f32.xlu0 %v1001
        %v1018 = vpop.xlane.xlu0 %1017
        %1019 = vadd.xlane.f32.xlu0 %v1002
        %v1020 = vpop.xlane.xlu0 %1019
        %1021 = vadd.xlane.f32.xlu0 %v1003
        %v1022 = vpop.xlane.xlu0 %1021
        %1023 = vadd.xlane.f32.xlu0 %v1004
        %v1024 = vpop.xlane.xlu0 %1023
        %1025 = vadd.xlane.f32.xlu0 %v1005
        %v1026 = vpop.xlane.xlu0 %1025
        %1027 = vadd.xlane.f32.xlu0 %v1006
        %v1028 = vpop.xlane.xlu0 %1027
        %1029 = vadd.xlane.f32.xlu0 %v1007
        %v1030 = vpop.xlane.xlu0 %1029
        %1031 = vadd.xlane.f32.xlu0 %v1008
        %v1032 = vpop.xlane.xlu0 %1031
        %1033 = vadd.xlane.f32.xlu0 %v1009
        %v1034 = vpop.xlane.xlu0 %1033
        %1035 = vadd.xlane.f32.xlu0 %v1010
        %v1036 = vpop.xlane.xlu0 %1035
        %1037 = vadd.xlane.f32.xlu0 %v1011
        %v1038 = vpop.xlane.xlu0 %1037
        %1039 = vadd.xlane.f32.xlu0 %v1012
        %v1040 = vpop.xlane.xlu0 %1039
        %1041 = vadd.xlane.f32.xlu0 %v1013
        %v1042 = vpop.xlane.xlu0 %1041
        %1043 = vadd.xlane.f32.xlu0 %v1014
        %v1044 = vpop.xlane.xlu0 %1043
        %1045 = vadd.xlane.f32.xlu0 %v1015
        %v1046 = vpop.xlane.xlu0 %1045
        %1047 = vadd.xlane.f32.xlu0 %v1016
        %v1048 = vpop.xlane.xlu0 %1047
        %v1049 = vrcp.pop 128.0
        %v1050 = vmul.f32 %v1018, %v1049
        %v1051 = vmul.f32 %v1020, %v1049
        %v1052 = vmul.f32 %v1022, %v1049
        %v1053 = vmul.f32 %v1024, %v1049
        %v1054 = vmul.f32 %v1026, %v1049
        %v1055 = vmul.f32 %v1028, %v1049
        %v1056 = vmul.f32 %v1030, %v1049
        %v1057 = vmul.f32 %v1032, %v1049
        %v1058 = vmul.f32 %v1034, %v1049
        %v1059 = vmul.f32 %v1036, %v1049
        %v1060 = vmul.f32 %v1038, %v1049
        %v1061 = vmul.f32 %v1040, %v1049
        %v1062 = vmul.f32 %v1042, %v1049
        %v1063 = vmul.f32 %v1044, %v1049
        %v1064 = vmul.f32 %v1046, %v1049
        %v1065 = vmul.f32 %v1048, %v1049
        %v1066 = vsub.f32 %v1001, %v1050
        %v1067 = vsub.f32 %v1002, %v1051
        %v1068 = vsub.f32 %v1003, %v1052
        %v1069 = vsub.f32 %v1004, %v1053
        %v1070 = vsub.f32 %v1005, %v1054
        %v1071 = vsub.f32 %v1006, %v1055
        %v1072 = vsub.f32 %v1007, %v1056
        %v1073 = vsub.f32 %v1008, %v1057
        %v1074 = vsub.f32 %v1009, %v1058
        %v1075 = vsub.f32 %v1010, %v1059
        %v1076 = vsub.f32 %v1011, %v1060
        %v1077 = vsub.f32 %v1012, %v1061
        %v1078 = vsub.f32 %v1013, %v1062
        %v1079 = vsub.f32 %v1014, %v1063
        %v1080 = vsub.f32 %v1015, %v1064
        %v1081 = vsub.f32 %v1016, %v1065
        %v1082 = vmul.f32 %v1066, %v1066
        %v1083 = vmul.f32 %v1067, %v1067
        %v1084 = vmul.f32 %v1068, %v1068
        %v1085 = vmul.f32 %v1069, %v1069
        %v1086 = vmul.f32 %v1070, %v1070
        %v1087 = vmul.f32 %v1071, %v1071
        %v1088 = vmul.f32 %v1072, %v1072
        %v1089 = vmul.f32 %v1073, %v1073
        %v1090 = vmul.f32 %v1074, %v1074
        %v1091 = vmul.f32 %v1075, %v1075
        %v1092 = vmul.f32 %v1076, %v1076
        %v1093 = vmul.f32 %v1077, %v1077
        %v1094 = vmul.f32 %v1078, %v1078
        %v1095 = vmul.f32 %v1079, %v1079
        %v1096 = vmul.f32 %v1080, %v1080
        %v1097 = vmul.f32 %v1081, %v1081
        %1098 = vadd.xlane.f32.xlu0 %v1082
        %v1099 = vpop.xlane.xlu0 %1098
        %1100 = vadd.xlane.f32.xlu0 %v1083
        %v1101 = vpop.xlane.xlu0 %1100
        %1102 = vadd.xlane.f32.xlu0 %v1084
        %v1103 = vpop.xlane.xlu0 %1102
        %1104 = vadd.xlane.f32.xlu0 %v1085
        %v1105 = vpop.xlane.xlu0 %1104
        %1106 = vadd.xlane.f32.xlu0 %v1086
        %v1107 = vpop.xlane.xlu0 %1106
        %1108 = vadd.xlane.f32.xlu0 %v1087
        %v1109 = vpop.xlane.xlu0 %1108
        %1110 = vadd.xlane.f32.xlu0 %v1088
        %v1111 = vpop.xlane.xlu0 %1110
        %1112 = vadd.xlane.f32.xlu0 %v1089
        %v1113 = vpop.xlane.xlu0 %1112
        %1114 = vadd.xlane.f32.xlu0 %v1090
        %v1115 = vpop.xlane.xlu0 %1114
        %1116 = vadd.xlane.f32.xlu0 %v1091
        %v1117 = vpop.xlane.xlu0 %1116
        %1118 = vadd.xlane.f32.xlu0 %v1092
        %v1119 = vpop.xlane.xlu0 %1118
        %1120 = vadd.xlane.f32.xlu0 %v1093
        %v1121 = vpop.xlane.xlu0 %1120
        %1122 = vadd.xlane.f32.xlu0 %v1094
        %v1123 = vpop.xlane.xlu0 %1122
        %1124 = vadd.xlane.f32.xlu0 %v1095
        %v1125 = vpop.xlane.xlu0 %1124
        %1126 = vadd.xlane.f32.xlu0 %v1096
        %v1127 = vpop.xlane.xlu0 %1126
        %1128 = vadd.xlane.f32.xlu0 %v1097
        %v1129 = vpop.xlane.xlu0 %1128
        %v1130 = vmul.f32 %v1099, %v1049
        %v1131 = vmul.f32 %v1101, %v1049
        %v1132 = vmul.f32 %v1103, %v1049
        %v1133 = vmul.f32 %v1105, %v1049
        %v1134 = vmul.f32 %v1107, %v1049
        %v1135 = vmul.f32 %v1109, %v1049
        %v1136 = vmul.f32 %v1111, %v1049
        %v1137 = vmul.f32 %v1113, %v1049
        %v1138 = vmul.f32 %v1115, %v1049
        %v1139 = vmul.f32 %v1117, %v1049
        %v1140 = vmul.f32 %v1119, %v1049
        %v1141 = vmul.f32 %v1121, %v1049
        %v1142 = vmul.f32 %v1123, %v1049
        %v1143 = vmul.f32 %v1125, %v1049
        %v1144 = vmul.f32 %v1127, %v1049
        %v1145 = vmul.f32 %v1129, %v1049
        %v1146 = vadd.f32 %v1130, 1e-12
        %v1147 = vadd.f32 %v1131, 1e-12
        %v1148 = vadd.f32 %v1132, 1e-12
        %v1149 = vadd.f32 %v1133, 1e-12
        %v1150 = vadd.f32 %v1134, 1e-12
        %v1151 = vadd.f32 %v1135, 1e-12
        %v1152 = vadd.f32 %v1136, 1e-12
        %v1153 = vadd.f32 %v1137, 1e-12
        %v1154 = vadd.f32 %v1138, 1e-12
        %v1155 = vadd.f32 %v1139, 1e-12
        %v1156 = vadd.f32 %v1140, 1e-12
        %v1157 = vadd.f32 %v1141, 1e-12
        %v1158 = vadd.f32 %v1142, 1e-12
        %v1159 = vadd.f32 %v1143, 1e-12
        %v1160 = vadd.f32 %v1144, 1e-12
        %v1161 = vadd.f32 %v1145, 1e-12
        %v1162 = vrsqrt.pop %v1146
        %v1163 = vrsqrt.pop %v1147
        %v1164 = vrsqrt.pop %v1148
        %v1165 = vrsqrt.pop %v1149
        %v1166 = vrsqrt.pop %v1150
        %v1167 = vrsqrt.pop %v1151
        %v1168 = vrsqrt.pop %v1152
        %v1169 = vrsqrt.pop %v1153
        %v1170 = vrsqrt.pop %v1154
        %v1171 = vrsqrt.pop %v1155
        %v1172 = vrsqrt.pop %v1156
        %v1173 = vrsqrt.pop %v1157
        %v1174 = vrsqrt.pop %v1158
        %v1175 = vrsqrt.pop %v1159
        %v1176 = vrsqrt.pop %v1160
        %v1177 = vrsqrt.pop %v1161
        %v1178 = vmul.f32 %v1066, %v1162
        %v1179 = vmul.f32 %v1067, %v1163
        %v1180 = vmul.f32 %v1068, %v1164
        %v1181 = vmul.f32 %v1069, %v1165
        %v1182 = vmul.f32 %v1070, %v1166
        %v1183 = vmul.f32 %v1071, %v1167
        %v1184 = vmul.f32 %v1072, %v1168
        %v1185 = vmul.f32 %v1073, %v1169
        %v1186 = vmul.f32 %v1074, %v1170
        %v1187 = vmul.f32 %v1075, %v1171
        %v1188 = vmul.f32 %v1076, %v1172
        %v1189 = vmul.f32 %v1077, %v1173
        %v1190 = vmul.f32 %v1078, %v1174
        %v1191 = vmul.f32 %v1079, %v1175
        %v1192 = vmul.f32 %v1080, %v1176
        %v1193 = vmul.f32 %v1081, %v1177
        %v1194 = vlaneseq
        %v1195 = vshrl.u32 %v1194, 7
        %v1196 = vsub.s32 0, %v1195
        %v1197 = vrot.slane %v356, %v1196
        %v1198 = vmul.f32 %v1178, %v1197
        %v1199 = vmul.f32 %v1179, %v1197
        %v1200 = vmul.f32 %v1180, %v1197
        %v1201 = vmul.f32 %v1181, %v1197
        %v1202 = vmul.f32 %v1182, %v1197
        %v1203 = vmul.f32 %v1183, %v1197
        %v1204 = vmul.f32 %v1184, %v1197
        %v1205 = vmul.f32 %v1185, %v1197
        %v1206 = vmul.f32 %v1186, %v1197
        %v1207 = vmul.f32 %v1187, %v1197
        %v1208 = vmul.f32 %v1188, %v1197
        %v1209 = vmul.f32 %v1189, %v1197
        %v1210 = vmul.f32 %v1190, %v1197
        %v1211 = vmul.f32 %v1191, %v1197
        %v1212 = vmul.f32 %v1192, %v1197
        %v1213 = vmul.f32 %v1193, %v1197
        %v1214 = vlaneseq
        %v1215 = vshrl.u32 %v1214, 7
        %v1216 = vsub.s32 1, %v1215
        %v1217 = vrot.slane %v356, %v1216
        %v1218 = vadd.f32 %v1198, %v1217
        %v1219 = vadd.f32 %v1199, %v1217
        %v1220 = vadd.f32 %v1200, %v1217
        %v1221 = vadd.f32 %v1201, %v1217
        %v1222 = vadd.f32 %v1202, %v1217
        %v1223 = vadd.f32 %v1203, %v1217
        %v1224 = vadd.f32 %v1204, %v1217
        %v1225 = vadd.f32 %v1205, %v1217
        %v1226 = vadd.f32 %v1206, %v1217
        %v1227 = vadd.f32 %v1207, %v1217
        %v1228 = vadd.f32 %v1208, %v1217
        %v1229 = vadd.f32 %v1209, %v1217
        %v1230 = vadd.f32 %v1210, %v1217
        %v1231 = vadd.f32 %v1211, %v1217
        %v1232 = vadd.f32 %v1212, %v1217
        %v1233 = vadd.f32 %v1213, %v1217
        %v1234 = vpack.c.bf16 %v1219, %v1218
        %v1235 = vpack.c.bf16 %v1221, %v1220
        %v1236 = vpack.c.bf16 %v1223, %v1222
        %v1237 = vpack.c.bf16 %v1225, %v1224
        %v1238 = vpack.c.bf16 %v1227, %v1226
        %v1239 = vpack.c.bf16 %v1229, %v1228
        %v1240 = vpack.c.bf16 %v1231, %v1230
        %v1241 = vpack.c.bf16 %v1233, %v1232
        %v1242 = vld [vmem:[%s6] sm:$0xf]
        %v1243 = vld [vmem:[%s6 + $0x4] sm:$0xf]
        %v1244 = vld [vmem:[%s6 + $0x8] sm:$0xf]
        %v1245 = vld [vmem:[%s6 + $0xc] sm:$0xf]
        %v1246 = vld [vmem:[%s6 + $0x10] sm:$0xf]
        %v1247 = vld [vmem:[%s6 + $0x14] sm:$0xf]
        %v1248 = vld [vmem:[%s6 + $0x18] sm:$0xf]
        %v1249 = vld [vmem:[%s6 + $0x1c] sm:$0xf]
        %v1250 = vld [vmem:[%s6 + $0x20] sm:$0xf]
        %v1251 = vld [vmem:[%s6 + $0x24] sm:$0xf]
        %v1252 = vld [vmem:[%s6 + $0x28] sm:$0xf]
        %v1253 = vld [vmem:[%s6 + $0x2c] sm:$0xf]
        %v1254 = vld [vmem:[%s6 + $0x30] sm:$0xf]
        %v1255 = vld [vmem:[%s6 + $0x34] sm:$0xf]
        %v1256 = vld [vmem:[%s6 + $0x38] sm:$0xf]
        %v1257 = vld [vmem:[%s6 + $0x3c] sm:$0xf]
        %v1258 = vlaneseq
        %v1259 = vshrl.u32 %v1258, 7
        %v1260 = vsub.s32 2, %v1259
        %v1261 = vrot.slane %v356, %v1260
        %v1278 = vunpack.c.l.b16 %v1242
        %v1279 = vunpack.c.l.b16 %v1243
        %v1280 = vunpack.c.l.b16 %v1244
        %v1281 = vunpack.c.l.b16 %v1245
        %v1282 = vunpack.c.l.b16 %v1246
        %v1283 = vunpack.c.l.b16 %v1247
        %v1284 = vunpack.c.l.b16 %v1248
        %v1285 = vunpack.c.l.b16 %v1249
        %v1286 = vunpack.c.l.b16 %v1250
        %v1287 = vunpack.c.l.b16 %v1251
        %v1288 = vunpack.c.l.b16 %v1252
        %v1289 = vunpack.c.l.b16 %v1253
        %v1290 = vunpack.c.l.b16 %v1254
        %v1291 = vunpack.c.l.b16 %v1255
        %v1292 = vunpack.c.l.b16 %v1256
        %v1293 = vunpack.c.l.b16 %v1257
        %v1294 = vpack.c.b16 %v1279, %v1278
        %v1295 = vpack.c.b16 %v1281, %v1280
        %v1296 = vpack.c.b16 %v1283, %v1282
        %v1297 = vpack.c.b16 %v1285, %v1284
        %v1298 = vpack.c.b16 %v1287, %v1286
        %v1299 = vpack.c.b16 %v1289, %v1288
        %v1300 = vpack.c.b16 %v1291, %v1290
        %v1301 = vpack.c.b16 %v1293, %v1292
        %1310 = vmatprep.subr.bf16.mxu0 0
        %1311 = vmatpush1.bf16.msra.mxu0 %v1294
        %1312 = vmatprep.subr.bf16.mxu0 0
        %1313 = vmatpush1.bf16.msra.mxu0 %v1295
        %1314 = vmatprep.subr.bf16.mxu0 0
        %1315 = vmatpush1.bf16.msra.mxu0 %v1296
        %1316 = vmatprep.subr.bf16.mxu0 0
        %1317 = vmatpush1.bf16.msra.mxu0 %v1297
        %1318 = vmatprep.subr.bf16.mxu0 0
        %1319 = vmatpush1.bf16.msra.mxu0 %v1298
        %1320 = vmatprep.subr.bf16.mxu0 0
        %1321 = vmatpush1.bf16.msra.mxu0 %v1299
        %1322 = vmatprep.subr.bf16.mxu0 0
        %1323 = vmatpush1.bf16.msra.mxu0 %v1300
        %1324 = vmatprep.subr.bf16.mxu0 0
        %1325 = vmatpush1.bf16.msra.mxu0 %v1301
        %1326 = vmatprep.subr.bf16.mxu0 0
        %1327 = vmatpush1.bf16.msra.mxu0 0
        %1328 = vmatprep.subr.bf16.mxu0 0
        %1329 = vmatpush1.bf16.msra.mxu0 0
        %1330 = vmatprep.subr.bf16.mxu0 0
        %1331 = vmatpush1.bf16.msra.mxu0 0
        %1332 = vmatprep.subr.bf16.mxu0 0
        %1333 = vmatpush1.bf16.msra.mxu0 0
        %1334 = vmatprep.subr.bf16.mxu0 0
        %1335 = vmatpush1.bf16.msra.mxu0 0
        %1336 = vmatprep.subr.bf16.mxu0 0
        %1337 = vmatpush1.bf16.msra.mxu0 0
        %1338 = vmatprep.subr.bf16.mxu0 0
        %1339 = vmatpush1.bf16.msra.mxu0 0
        %1340 = vmatprep.subr.bf16.mxu0 0
        %1341 = vmatpush1.bf16.msra.mxu0 0
        %1342 = vmatprep.mubr.bf16.mxu0 0
        %1343 = vmatmul.mubr.bf16.gmra.mrb[0].mxu0 %v1234
        %v1344 = vpop.f32.mrb[0].mxu0
        %v1345 = vadd.f32 %v1261, %v1344
        %v1346 = vpop.f32.mrb[0].mxu0
        %v1347 = vpop.f32.mrb[0].mxu0
        %v1348 = vadd.f32 %v1261, %v1347
        %v1349 = vpop.f32.mrb[0].mxu0
        %1350 = vmatprep.mubr.bf16.mxu0 0
        %1351 = vmatmul.mubr.bf16.gmra.mrb[0].mxu0 %v1235
        %v1352 = vpop.f32.mrb[0].mxu0
        %v1353 = vadd.f32 %v1261, %v1352
        %v1354 = vpop.f32.mrb[0].mxu0
        %v1355 = vpop.f32.mrb[0].mxu0
        %v1356 = vadd.f32 %v1261, %v1355
        %v1357 = vpop.f32.mrb[0].mxu0
        %1358 = vmatprep.mubr.bf16.mxu0 0
        %1359 = vmatmul.mubr.bf16.gmra.mrb[0].mxu0 %v1236
        %v1360 = vpop.f32.mrb[0].mxu0
        %v1361 = vadd.f32 %v1261, %v1360
        %v1362 = vpop.f32.mrb[0].mxu0
        %v1363 = vpop.f32.mrb[0].mxu0
        %v1364 = vadd.f32 %v1261, %v1363
        %v1365 = vpop.f32.mrb[0].mxu0
        %1366 = vmatprep.mubr.bf16.mxu0 0
        %1367 = vmatmul.mubr.bf16.gmra.mrb[0].mxu0 %v1237
        %v1368 = vpop.f32.mrb[0].mxu0
        %v1369 = vadd.f32 %v1261, %v1368
        %v1370 = vpop.f32.mrb[0].mxu0
        %v1371 = vpop.f32.mrb[0].mxu0
        %v1372 = vadd.f32 %v1261, %v1371
        %v1373 = vpop.f32.mrb[0].mxu0
        %1374 = vmatprep.mubr.bf16.mxu0 0
        %1375 = vmatmul.mubr.bf16.gmra.mrb[0].mxu0 %v1238
        %v1376 = vpop.f32.mrb[0].mxu0
        %v1377 = vadd.f32 %v1261, %v1376
        %v1378 = vpop.f32.mrb[0].mxu0
        %v1379 = vpop.f32.mrb[0].mxu0
        %v1380 = vadd.f32 %v1261, %v1379
        %v1381 = vpop.f32.mrb[0].mxu0
        %1382 = vmatprep.mubr.bf16.mxu0 0
        %1383 = vmatmul.mubr.bf16.gmra.mrb[0].mxu0 %v1239
        %v1384 = vpop.f32.mrb[0].mxu0
        %v1385 = vadd.f32 %v1261, %v1384
        %v1386 = vpop.f32.mrb[0].mxu0
        %v1387 = vpop.f32.mrb[0].mxu0
        %v1388 = vadd.f32 %v1261, %v1387
        %v1389 = vpop.f32.mrb[0].mxu0
        %1390 = vmatprep.mubr.bf16.mxu0 0
        %1391 = vmatmul.mubr.bf16.gmra.mrb[0].mxu0 %v1240
        %v1392 = vpop.f32.mrb[0].mxu0
        %v1393 = vadd.f32 %v1261, %v1392
        %v1394 = vpop.f32.mrb[0].mxu0
        %v1395 = vpop.f32.mrb[0].mxu0
        %v1396 = vadd.f32 %v1261, %v1395
        %v1397 = vpop.f32.mrb[0].mxu0
        %1398 = vmatprep.mubr.bf16.mxu0 0
        %1399 = vmatmul.mubr.bf16.gmra.mrb[0].mxu0 %v1241
        %v1400 = vpop.f32.mrb[0].mxu0
        %v1401 = vadd.f32 %v1261, %v1400
        %v1402 = vpop.f32.mrb[0].mxu0
        %v1403 = vpop.f32.mrb[0].mxu0
        %v1404 = vadd.f32 %v1261, %v1403
        %v1405 = vpop.f32.mrb[0].mxu0
        %1406 = vdwg.mxu0
        %v1407 = vadd.f32 %v1218, %v1345
        %v1408 = vadd.f32 %v1219, %v1348
        %v1409 = vadd.f32 %v1220, %v1353
        %v1410 = vadd.f32 %v1221, %v1356
        %v1411 = vadd.f32 %v1222, %v1361
        %v1412 = vadd.f32 %v1223, %v1364
        %v1413 = vadd.f32 %v1224, %v1369
        %v1414 = vadd.f32 %v1225, %v1372
        %v1415 = vadd.f32 %v1226, %v1377
        %v1416 = vadd.f32 %v1227, %v1380
        %v1417 = vadd.f32 %v1228, %v1385
        %v1418 = vadd.f32 %v1229, %v1388
        %v1419 = vadd.f32 %v1230, %v1393
        %v1420 = vadd.f32 %v1231, %v1396
        %v1421 = vadd.f32 %v1232, %v1401
        %v1422 = vadd.f32 %v1233, %v1404
        %1423 = vadd.xlane.f32.xlu0 %v1407
        %v1424 = vpop.xlane.xlu0 %1423
        %1425 = vadd.xlane.f32.xlu0 %v1408
        %v1426 = vpop.xlane.xlu0 %1425
        %1427 = vadd.xlane.f32.xlu0 %v1409
        %v1428 = vpop.xlane.xlu0 %1427
        %1429 = vadd.xlane.f32.xlu0 %v1410
        %v1430 = vpop.xlane.xlu0 %1429
        %1431 = vadd.xlane.f32.xlu0 %v1411
        %v1432 = vpop.xlane.xlu0 %1431
        %1433 = vadd.xlane.f32.xlu0 %v1412
        %v1434 = vpop.xlane.xlu0 %1433
        %1435 = vadd.xlane.f32.xlu0 %v1413
        %v1436 = vpop.xlane.xlu0 %1435
        %1437 = vadd.xlane.f32.xlu0 %v1414
        %v1438 = vpop.xlane.xlu0 %1437
        %1439 = vadd.xlane.f32.xlu0 %v1415
        %v1440 = vpop.xlane.xlu0 %1439
        %1441 = vadd.xlane.f32.xlu0 %v1416
        %v1442 = vpop.xlane.xlu0 %1441
        %1443 = vadd.xlane.f32.xlu0 %v1417
        %v1444 = vpop.xlane.xlu0 %1443
        %1445 = vadd.xlane.f32.xlu0 %v1418
        %v1446 = vpop.xlane.xlu0 %1445
        %1447 = vadd.xlane.f32.xlu0 %v1419
        %v1448 = vpop.xlane.xlu0 %1447
        %1449 = vadd.xlane.f32.xlu0 %v1420
        %v1450 = vpop.xlane.xlu0 %1449
        %1451 = vadd.xlane.f32.xlu0 %v1421
        %v1452 = vpop.xlane.xlu0 %1451
        %1453 = vadd.xlane.f32.xlu0 %v1422
        %v1454 = vpop.xlane.xlu0 %1453
        %v1455 = vmul.f32 %v1424, %v1049
        %v1456 = vmul.f32 %v1426, %v1049
        %v1457 = vmul.f32 %v1428, %v1049
        %v1458 = vmul.f32 %v1430, %v1049
        %v1459 = vmul.f32 %v1432, %v1049
        %v1460 = vmul.f32 %v1434, %v1049
        %v1461 = vmul.f32 %v1436, %v1049
        %v1462 = vmul.f32 %v1438, %v1049
        %v1463 = vmul.f32 %v1440, %v1049
        %v1464 = vmul.f32 %v1442, %v1049
        %v1465 = vmul.f32 %v1444, %v1049
        %v1466 = vmul.f32 %v1446, %v1049
        %v1467 = vmul.f32 %v1448, %v1049
        %v1468 = vmul.f32 %v1450, %v1049
        %v1469 = vmul.f32 %v1452, %v1049
        %v1470 = vmul.f32 %v1454, %v1049
        %v1471 = vsub.f32 %v1407, %v1455
        %v1472 = vsub.f32 %v1408, %v1456
        %v1473 = vsub.f32 %v1409, %v1457
        %v1474 = vsub.f32 %v1410, %v1458
        %v1475 = vsub.f32 %v1411, %v1459
        %v1476 = vsub.f32 %v1412, %v1460
        %v1477 = vsub.f32 %v1413, %v1461
        %v1478 = vsub.f32 %v1414, %v1462
        %v1479 = vsub.f32 %v1415, %v1463
        %v1480 = vsub.f32 %v1416, %v1464
        %v1481 = vsub.f32 %v1417, %v1465
        %v1482 = vsub.f32 %v1418, %v1466
        %v1483 = vsub.f32 %v1419, %v1467
        %v1484 = vsub.f32 %v1420, %v1468
        %v1485 = vsub.f32 %v1421, %v1469
        %v1486 = vsub.f32 %v1422, %v1470
        %v1487 = vmul.f32 %v1471, %v1471
        %v1488 = vmul.f32 %v1472, %v1472
        %v1489 = vmul.f32 %v1473, %v1473
        %v1490 = vmul.f32 %v1474, %v1474
        %v1491 = vmul.f32 %v1475, %v1475
        %v1492 = vmul.f32 %v1476, %v1476
        %v1493 = vmul.f32 %v1477, %v1477
        %v1494 = vmul.f32 %v1478, %v1478
        %v1495 = vmul.f32 %v1479, %v1479
        %v1496 = vmul.f32 %v1480, %v1480
        %v1497 = vmul.f32 %v1481, %v1481
        %v1498 = vmul.f32 %v1482, %v1482
        %v1499 = vmul.f32 %v1483, %v1483
        %v1500 = vmul.f32 %v1484, %v1484
        %v1501 = vmul.f32 %v1485, %v1485
        %v1502 = vmul.f32 %v1486, %v1486
        %1503 = vadd.xlane.f32.xlu0 %v1487
        %v1504 = vpop.xlane.xlu0 %1503
        %1505 = vadd.xlane.f32.xlu0 %v1488
        %v1506 = vpop.xlane.xlu0 %1505
        %1507 = vadd.xlane.f32.xlu0 %v1489
        %v1508 = vpop.xlane.xlu0 %1507
        %1509 = vadd.xlane.f32.xlu0 %v1490
        %v1510 = vpop.xlane.xlu0 %1509
        %1511 = vadd.xlane.f32.xlu0 %v1491
        %v1512 = vpop.xlane.xlu0 %1511
        %1513 = vadd.xlane.f32.xlu0 %v1492
        %v1514 = vpop.xlane.xlu0 %1513
        %1515 = vadd.xlane.f32.xlu0 %v1493
        %v1516 = vpop.xlane.xlu0 %1515
        %1517 = vadd.xlane.f32.xlu0 %v1494
        %v1518 = vpop.xlane.xlu0 %1517
        %1519 = vadd.xlane.f32.xlu0 %v1495
        %v1520 = vpop.xlane.xlu0 %1519
        %1521 = vadd.xlane.f32.xlu0 %v1496
        %v1522 = vpop.xlane.xlu0 %1521
        %1523 = vadd.xlane.f32.xlu0 %v1497
        %v1524 = vpop.xlane.xlu0 %1523
        %1525 = vadd.xlane.f32.xlu0 %v1498
        %v1526 = vpop.xlane.xlu0 %1525
        %1527 = vadd.xlane.f32.xlu0 %v1499
        %v1528 = vpop.xlane.xlu0 %1527
        %1529 = vadd.xlane.f32.xlu0 %v1500
        %v1530 = vpop.xlane.xlu0 %1529
        %1531 = vadd.xlane.f32.xlu0 %v1501
        %v1532 = vpop.xlane.xlu0 %1531
        %1533 = vadd.xlane.f32.xlu0 %v1502
        %v1534 = vpop.xlane.xlu0 %1533
        %v1535 = vmul.f32 %v1504, %v1049
        %v1536 = vmul.f32 %v1506, %v1049
        %v1537 = vmul.f32 %v1508, %v1049
        %v1538 = vmul.f32 %v1510, %v1049
        %v1539 = vmul.f32 %v1512, %v1049
        %v1540 = vmul.f32 %v1514, %v1049
        %v1541 = vmul.f32 %v1516, %v1049
        %v1542 = vmul.f32 %v1518, %v1049
        %v1543 = vmul.f32 %v1520, %v1049
        %v1544 = vmul.f32 %v1522, %v1049
        %v1545 = vmul.f32 %v1524, %v1049
        %v1546 = vmul.f32 %v1526, %v1049
        %v1547 = vmul.f32 %v1528, %v1049
        %v1548 = vmul.f32 %v1530, %v1049
        %v1549 = vmul.f32 %v1532, %v1049
        %v1550 = vmul.f32 %v1534, %v1049
        %v1551 = vadd.f32 %v1535, 1e-12
        %v1552 = vadd.f32 %v1536, 1e-12
        %v1553 = vadd.f32 %v1537, 1e-12
        %v1554 = vadd.f32 %v1538, 1e-12
        %v1555 = vadd.f32 %v1539, 1e-12
        %v1556 = vadd.f32 %v1540, 1e-12
        %v1557 = vadd.f32 %v1541, 1e-12
        %v1558 = vadd.f32 %v1542, 1e-12
        %v1559 = vadd.f32 %v1543, 1e-12
        %v1560 = vadd.f32 %v1544, 1e-12
        %v1561 = vadd.f32 %v1545, 1e-12
        %v1562 = vadd.f32 %v1546, 1e-12
        %v1563 = vadd.f32 %v1547, 1e-12
        %v1564 = vadd.f32 %v1548, 1e-12
        %v1565 = vadd.f32 %v1549, 1e-12
        %v1566 = vadd.f32 %v1550, 1e-12
        %v1567 = vrsqrt.pop %v1551
        %v1568 = vrsqrt.pop %v1552
        %v1569 = vrsqrt.pop %v1553
        %v1570 = vrsqrt.pop %v1554
        %v1571 = vrsqrt.pop %v1555
        %v1572 = vrsqrt.pop %v1556
        %v1573 = vrsqrt.pop %v1557
        %v1574 = vrsqrt.pop %v1558
        %v1575 = vrsqrt.pop %v1559
        %v1576 = vrsqrt.pop %v1560
        %v1577 = vrsqrt.pop %v1561
        %v1578 = vrsqrt.pop %v1562
        %v1579 = vrsqrt.pop %v1563
        %v1580 = vrsqrt.pop %v1564
        %v1581 = vrsqrt.pop %v1565
        %v1582 = vrsqrt.pop %v1566
        %v1583 = vmul.f32 %v1471, %v1567
        %v1584 = vmul.f32 %v1472, %v1568
        %v1585 = vmul.f32 %v1473, %v1569
        %v1586 = vmul.f32 %v1474, %v1570
        %v1587 = vmul.f32 %v1475, %v1571
        %v1588 = vmul.f32 %v1476, %v1572
        %v1589 = vmul.f32 %v1477, %v1573
        %v1590 = vmul.f32 %v1478, %v1574
        %v1591 = vmul.f32 %v1479, %v1575
        %v1592 = vmul.f32 %v1480, %v1576
        %v1593 = vmul.f32 %v1481, %v1577
        %v1594 = vmul.f32 %v1482, %v1578
        %v1595 = vmul.f32 %v1483, %v1579
        %v1596 = vmul.f32 %v1484, %v1580
        %v1597 = vmul.f32 %v1485, %v1581
        %v1598 = vmul.f32 %v1486, %v1582
        %v1599 = vlaneseq
        %v1600 = vshrl.u32 %v1599, 7
        %v1601 = vsub.s32 3, %v1600
        %v1602 = vrot.slane %v356, %v1601
        %v1603 = vmul.f32 %v1583, %v1602
        %v1604 = vmul.f32 %v1584, %v1602
        %v1605 = vmul.f32 %v1585, %v1602
        %v1606 = vmul.f32 %v1586, %v1602
        %v1607 = vmul.f32 %v1587, %v1602
        %v1608 = vmul.f32 %v1588, %v1602
        %v1609 = vmul.f32 %v1589, %v1602
        %v1610 = vmul.f32 %v1590, %v1602
        %v1611 = vmul.f32 %v1591, %v1602
        %v1612 = vmul.f32 %v1592, %v1602
        %v1613 = vmul.f32 %v1593, %v1602
        %v1614 = vmul.f32 %v1594, %v1602
        %v1615 = vmul.f32 %v1595, %v1602
        %v1616 = vmul.f32 %v1596, %v1602
        %v1617 = vmul.f32 %v1597, %v1602
        %v1618 = vmul.f32 %v1598, %v1602
        %v1619 = vlaneseq
        %v1620 = vshrl.u32 %v1619, 7
        %v1621 = vsub.s32 4, %v1620
        %v1622 = vrot.slane %v356, %v1621
        %v1623 = vadd.f32 %v1603, %v1622
        %v1624 = vadd.f32 %v1604, %v1622
        %v1625 = vadd.f32 %v1605, %v1622
        %v1626 = vadd.f32 %v1606, %v1622
        %v1627 = vadd.f32 %v1607, %v1622
        %v1628 = vadd.f32 %v1608, %v1622
        %v1629 = vadd.f32 %v1609, %v1622
        %v1630 = vadd.f32 %v1610, %v1622
        %v1631 = vadd.f32 %v1611, %v1622
        %v1632 = vadd.f32 %v1612, %v1622
        %v1633 = vadd.f32 %v1613, %v1622
        %v1634 = vadd.f32 %v1614, %v1622
        %v1635 = vadd.f32 %v1615, %v1622
        %v1636 = vadd.f32 %v1616, %v1622
        %v1637 = vadd.f32 %v1617, %v1622
        %v1638 = vadd.f32 %v1618, %v1622
        %1639 = vst [vmem:[%s339] sm:$0xff] %v1623
        %1640 = vst [vmem:[%s339 + $0x8] sm:$0xff] %v1624
        %1641 = vst [vmem:[%s339 + $0x10] sm:$0xff] %v1625
        %1642 = vst [vmem:[%s339 + $0x18] sm:$0xff] %v1626
        %1643 = vst [vmem:[%s339 + $0x20] sm:$0xff] %v1627
        %1644 = vst [vmem:[%s339 + $0x28] sm:$0xff] %v1628
        %1645 = vst [vmem:[%s339 + $0x30] sm:$0xff] %v1629
        %1646 = vst [vmem:[%s339 + $0x38] sm:$0xff] %v1630
        %1647 = vst [vmem:[%s339 + $0x40] sm:$0xff] %v1631
        %1648 = vst [vmem:[%s339 + $0x48] sm:$0xff] %v1632
        %1649 = vst [vmem:[%s339 + $0x50] sm:$0xff] %v1633
        %1650 = vst [vmem:[%s339 + $0x58] sm:$0xff] %v1634
        %1651 = vst [vmem:[%s339 + $0x60] sm:$0xff] %v1635
        %1652 = vst [vmem:[%s339 + $0x68] sm:$0xff] %v1636
        %1653 = vst [vmem:[%s339 + $0x70] sm:$0xff] %v1637
        %1654 = vst [vmem:[%s339 + $0x78] sm:$0xff] %v1638
        %s1655 = smul.u32 %s25, 2
        %v1656 = vlaneseq
        %v1657 = vshrl.u32 %v1656, 7
        %v1658 = vld [vmem:[#allocation2] sm:$0xff]
        %v1659 = vstv %s1655
        %vm1660 = vcmp.eq.s32.totalorder %v1657, %v1659
        %v1661 = vsel %vm1660, 1, 0
        %vm1662 = vcmp.eq.s32.totalorder %v1661, 1
        %v1663 = vlaneseq
        %v1664 = vshrl.u32 %v1663, 7
        %v1665 = vsub.s32 0, %v1664
        %v1666 = vrot.slane %v1623, %v1665
        %v1667 = vsel %vm1662, %v1666, %v1658
        %s1668 = sadd.s32 %s1655, 1
        %v1669 = vstv %s1668
        %vm1670 = vcmp.eq.s32.totalorder %v1657, %v1669
        %v1671 = vsel %vm1670, 1, 0
        %vm1672 = vcmp.eq.s32.totalorder %v1671, 1
        %v1673 = vlaneseq
        %v1674 = vshrl.u32 %v1673, 7
        %v1675 = vsub.s32 0, %v1674
        %v1676 = vrot.slane %v1631, %v1675
        %v1677 = vsel %vm1672, %v1676, %v1667
        %1678 = vst [vmem:[#allocation2] sm:$0xff] %v1677
        %p1679 = scmp.eq.s32.totalorder %s25, 1
        // Predicated region
        $region57: #{tpu_custom_call.1} parent=51 // pred_check
          %p1680 = pneg %p1679
        $region58: #{tpu_custom_call.1} parent=51 // pred_check_branch
          %1682 = sbr.rel (%p1680) target = $region60
        $region59: #{tpu_custom_call.1} parent=51 // pred_region
          %v1683 = vld [vmem:[#allocation2] sm:$0xff]
          %v1684 = vpack.c.bf16 %v1683, %v1683
          %v1685 = vld [vmem:[%s7] sm:$0xf]
          %v1686 = vld [vmem:[%s7 + $0x4] sm:$0xf]
          %v1687 = vld [vmem:[%s7 + $0x8] sm:$0xf]
          %v1688 = vld [vmem:[%s7 + $0xc] sm:$0xf]
          %v1689 = vld [vmem:[%s7 + $0x10] sm:$0xf]
          %v1690 = vld [vmem:[%s7 + $0x14] sm:$0xf]
          %v1691 = vld [vmem:[%s7 + $0x18] sm:$0xf]
          %v1692 = vld [vmem:[%s7 + $0x1c] sm:$0xf]
          %v1693 = vld [vmem:[%s7 + $0x20] sm:$0xf]
          %v1694 = vld [vmem:[%s7 + $0x24] sm:$0xf]
          %v1695 = vld [vmem:[%s7 + $0x28] sm:$0xf]
          %v1696 = vld [vmem:[%s7 + $0x2c] sm:$0xf]
          %v1697 = vld [vmem:[%s7 + $0x30] sm:$0xf]
          %v1698 = vld [vmem:[%s7 + $0x34] sm:$0xf]
          %v1699 = vld [vmem:[%s7 + $0x38] sm:$0xf]
          %v1700 = vld [vmem:[%s7 + $0x3c] sm:$0xf]
          %v1701 = vlaneseq
          %v1702 = vshrl.u32 %v1701, 7
          %v1703 = vsub.s32 5, %v1702
          %v1704 = vrot.slane %v356, %v1703
          %v1721 = vunpack.c.l.b16 %v1685
          %v1722 = vunpack.c.l.b16 %v1686
          %v1723 = vunpack.c.l.b16 %v1687
          %v1724 = vunpack.c.l.b16 %v1688
          %v1725 = vunpack.c.l.b16 %v1689
          %v1726 = vunpack.c.l.b16 %v1690
          %v1727 = vunpack.c.l.b16 %v1691
          %v1728 = vunpack.c.l.b16 %v1692
          %v1729 = vunpack.c.l.b16 %v1693
          %v1730 = vunpack.c.l.b16 %v1694
          %v1731 = vunpack.c.l.b16 %v1695
          %v1732 = vunpack.c.l.b16 %v1696
          %v1733 = vunpack.c.l.b16 %v1697
          %v1734 = vunpack.c.l.b16 %v1698
          %v1735 = vunpack.c.l.b16 %v1699
          %v1736 = vunpack.c.l.b16 %v1700
          %v1737 = vpack.c.b16 %v1722, %v1721
          %v1738 = vpack.c.b16 %v1724, %v1723
          %v1739 = vpack.c.b16 %v1726, %v1725
          %v1740 = vpack.c.b16 %v1728, %v1727
          %v1741 = vpack.c.b16 %v1730, %v1729
          %v1742 = vpack.c.b16 %v1732, %v1731
          %v1743 = vpack.c.b16 %v1734, %v1733
          %v1744 = vpack.c.b16 %v1736, %v1735
          %1753 = vmatprep.subr.bf16.mxu0 0
          %1754 = vmatpush1.bf16.msra.mxu0 %v1737
          %1755 = vmatprep.subr.bf16.mxu0 0
          %1756 = vmatpush1.bf16.msra.mxu0 %v1738
          %1757 = vmatprep.subr.bf16.mxu0 0
          %1758 = vmatpush1.bf16.msra.mxu0 %v1739
          %1759 = vmatprep.subr.bf16.mxu0 0
          %1760 = vmatpush1.bf16.msra.mxu0 %v1740
          %1761 = vmatprep.subr.bf16.mxu0 0
          %1762 = vmatpush1.bf16.msra.mxu0 %v1741
          %1763 = vmatprep.subr.bf16.mxu0 0
          %1764 = vmatpush1.bf16.msra.mxu0 %v1742
          %1765 = vmatprep.subr.bf16.mxu0 0
          %1766 = vmatpush1.bf16.msra.mxu0 %v1743
          %1767 = vmatprep.subr.bf16.mxu0 0
          %1768 = vmatpush1.bf16.msra.mxu0 %v1744
          %1769 = vmatprep.subr.bf16.mxu0 0
          %1770 = vmatpush1.bf16.msra.mxu0 0
          %1771 = vmatprep.subr.bf16.mxu0 0
          %1772 = vmatpush1.bf16.msra.mxu0 0
          %1773 = vmatprep.subr.bf16.mxu0 0
          %1774 = vmatpush1.bf16.msra.mxu0 0
          %1775 = vmatprep.subr.bf16.mxu0 0
          %1776 = vmatpush1.bf16.msra.mxu0 0
          %1777 = vmatprep.subr.bf16.mxu0 0
          %1778 = vmatpush1.bf16.msra.mxu0 0
          %1779 = vmatprep.subr.bf16.mxu0 0
          %1780 = vmatpush1.bf16.msra.mxu0 0
          %1781 = vmatprep.subr.bf16.mxu0 0
          %1782 = vmatpush1.bf16.msra.mxu0 0
          %1783 = vmatprep.subr.bf16.mxu0 0
          %1784 = vmatpush1.bf16.msra.mxu0 0
          %1785 = vmatprep.mubr.bf16.mxu0 0
          %1786 = vmatmul.mubr.bf16.gmra.mrb[0].mxu0 %v1684
          %v1787 = vpop.f32.mrb[0].mxu0
          %v1788 = vadd.f32 %v1704, %v1787
          %v1789 = vpop.f32.mrb[0].mxu0
          %v1790 = vpop.f32.mrb[0].mxu0
          %v1791 = vpop.f32.mrb[0].mxu0
          %1792 = vdwg.mxu0
          %v1793 = vtanh.pop %v1788
          %1794 = vst [vmem:[#allocation5] sm:$0xff] %v1793
        $region60: #{tpu_custom_call.1} parent=51 // pred_fallthru
          _
        %s1795 = sand.u32 %s211, 1
        %s1796 = scalar_lea.sflag [#allocation4], %s1795
        %s1797 = sand.u32 %s211, 1
        %s1798 = smul.addr %s1797, 128
        %s1799 = scalar_lea.vmem [#allocation3], %s1798
        // Predicated region
        $region61: #{tpu_custom_call.1} parent=51 // pred_check
          %p1800 = pneg %p221
        $region62: #{tpu_custom_call.1} parent=51 // pred_check_branch
          %1802 = sbr.rel (%p1800) target = $region64
        $region63: #{tpu_custom_call.1} parent=51 // pred_region
          %s1803 = smul.u32 16, %s25
          %s1805 = ssub.s32 2048, 2048
          %1806 = vsyncadd %s1796, %s1805
          %s1807 = smul.addr %s1803, 128
          %s1808 = scalar_lea.hbm %s8, %s1807
          %s1809 = sshll.u32 %s1799, 4
          %s1810 = int_to_ptr.vmem [resolvable:$true] %s1809
          %1815 = dma.vmem_to_hbm [thread:$0]  %s1810, 2048, %s1808, %s1796, 128, 128, 8
        $region64: #{tpu_custom_call.1} parent=51 // pred_fallthru
          _
        // Predicated region
        $region65: #{tpu_custom_call.1} parent=51 // pred_check
          %p1816 = pneg %p242
        $region66: #{tpu_custom_call.1} parent=51 // pred_check_branch
          %1818 = sbr.rel (%p1816) target = $region68
        $region67: #{tpu_custom_call.1} parent=51 // pred_region
          %s1820 = ssub.s32 128, 128
          %1821 = vsyncadd [#allocation6], %s1820
          %s1823 = sshll.u32 [#allocation5], 4
          %s1824 = int_to_ptr.vmem [resolvable:$true] %s1823
          %1826 = dma.vmem_to_hbm [thread:$0]  %s1824, 128, %s9, [#allocation6]
        $region68: #{tpu_custom_call.1} parent=51 // pred_fallthru
          _
        // Predicated region
        $region69: #{tpu_custom_call.1} parent=51 // pred_check
          %p1827 = pneg %p242
        $region70: #{tpu_custom_call.1} parent=51 // pred_check_branch
          %1829 = sbr.rel (%p1827) target = $region72
        $region71: #{tpu_custom_call.1} parent=51 // pred_region
          %1830 = dma.done [#allocation6], 128
        $region72: #{tpu_custom_call.1} parent=51 // pred_fallthru
          _
      $region52: #{tpu_custom_call.1} parent=5 // pred_fallthru
        _
      %p1831 = scmp.le.s32.totalorder 2, %s20
      // Predicated region
      $region73: #{tpu_custom_call.1} parent=5 // pred_check
        %p1832 = pneg %p1831
      $region74: #{tpu_custom_call.1} parent=5 // pred_check_branch
        %1834 = sbr.rel (%p1832) target = $region76
      $region75: #{tpu_custom_call.1} parent=5 // pred_region
        %s1835 = ssub.s32 %s20, 2
        // Predicated region
        $region77: #{tpu_custom_call.1} parent=75 // pred_check
          %p1836 = pneg %p227
        $region78: #{tpu_custom_call.1} parent=75 // pred_check_branch
          %1838 = sbr.rel (%p1836) target = $region80
        $region79: #{tpu_custom_call.1} parent=75 // pred_region
          %s1839 = sand.u32 %s212, 1
          %s1840 = scalar_lea.sflag [#allocation4], %s1839
          %s1841 = sand.u32 %s212, 1
          %s1842 = smul.addr %s1841, 128
          %s1843 = scalar_lea.vmem [#allocation3], %s1842
          %1844 = dma.done %s1840, 2048
        $region80: #{tpu_custom_call.1} parent=75 // pred_fallthru
          _
      $region76: #{tpu_custom_call.1} parent=5 // pred_fallthru
        _
    $region6: #{tpu_custom_call.1} parent=1 // loop_footer
      %s24 = sadd.s32 1, %s20
    $region7: #{tpu_custom_call.1} parent=1 // loop_footer_branch
      %19 = sbr.rel target = $region3
    $region8: #{tpu_custom_call.1} parent=1 // loop_exit
      _
    %1845 = vsyncpa [#allocation4], 1
    %s1846 = scalar_lea.sflag [#allocation4], 1
    %1847 = vsyncpa %s1846, 1
    %1848 = vsyncpa [#allocation6], 1

</llo_original>
